<compile_context>
chip_gen: v6e
topology: v6e:2x2x1
jax: 0.10.0
libtpu: 0.0.40
codegen_flags: <defaults>
</compile_context>

<pallas_src>
import functools

import jax
import jax.numpy as jnp
from jax.experimental import pallas as pl
from jax.experimental.pallas import tpu as pltpu


# ---------------------------------------------------------------------------
# Geometry helpers
# ---------------------------------------------------------------------------

def _pyramid_geometry(H, W, num_levels):
    """Per-level (kernel_size, n_h, n_w) with PyTorch floor-pooling semantics."""
    geoms = []
    for i in range(num_levels):
        ks = H // (2 ** i)                     # kernel_size = stride = h // 2**i
        if ks < 1 or ks > H or ks > W:
            raise ValueError(
                f"num_levels={num_levels} invalid for input {H}x{W}: level {i} "
                f"kernel_size={ks} (PyTorch F.max_pool2d would also fail).")
        nh = (H - ks) // ks + 1
        nw = (W - ks) // ks + 1
        geoms.append((ks, nh, nw))
    return geoms


def _is_nested(geoms, H, W):
    """True if every level's windows are exact unions of finest-level cells."""
    ks_f = geoms[-1][0]
    nh_f, nw_f = H // ks_f, W // ks_f
    for (ks, nh, nw) in geoms:
        if ks % ks_f:
            return False
        g = ks // ks_f
        if nh * g > nh_f or nw * g > nw_f:
            return False
    return True


# ---------------------------------------------------------------------------
# Kernel
# ---------------------------------------------------------------------------

def _reduce_window(w, pool_type, red_axes, count):
    """Reduce the window axes of w (axes given from last to first)."""
    if pool_type == 'max_pool':
        r = w
        for ax in red_axes:
            r = r.max(axis=ax)
        return r
    # avg: accumulate in f32 via the reduction dtype only (no full-block upcast)
    r = w.sum(axis=red_axes[0], dtype=jnp.float32)
    for ax in red_axes[1:]:
        r = r.sum(axis=ax)
    return r * (1.0 / float(count))


def _spp_kernel(*refs, geoms, pool_type, nested, ks_f):
    num_levels = len(geoms)
    n_in = 1 if nested else num_levels
    x_refs, o_refs = refs[:n_in], refs[n_in:]

    if nested:
        v = x_refs[0][...]                       # (TB, TC, NHf, KSf, NWf, KSf)
        TB, TC = v.shape[0], v.shape[1]

    for lvl, (ks, nh, nw) in enumerate(geoms):
        if nested:
            g = ks // ks_f
            if g == 1:                           # finest level: window axes 3, 5
                w, red_axes = v, (5, 3)
            else:
                # Group g x g finest cells per window.  The reshape splits a
                # major axis (NHf -> nh, g) and the sublane axis
                # (NWf -> nw, g); the lane axis (KSf) is untouched.
                w = v[:, :, :nh * g, :, :nw * g, :]
                w = w.reshape(TB, TC, nh, g, ks_f, nw, g, ks_f)
                red_axes = (7, 6, 4, 3)
        else:
            w, red_axes = x_refs[lvl][...], (5, 3)   # (TB, TC, nh, ks, nw, ks)
        r = _reduce_window(w, pool_type, red_axes, ks * ks)
        o_refs[lvl][...] = r.astype(o_refs[lvl].dtype)   # one full-block store


# ---------------------------------------------------------------------------
# Tiling / VMEM sizing
# ---------------------------------------------------------------------------

def _divisors(n):
    return [d for d in range(1, n + 1) if n % d == 0]


def _padded_bytes(shape, itemsize):
    """VMEM footprint of one block: minor two dims padded to (8, 128) tiles."""
    lead = 1
    for d in shape[:-2]:
        lead *= d
    sub = -(-shape[-2] // 8) * 8
    lane = -(-shape[-1] // 128) * 128
    return lead * sub * lane * itemsize


def _vmem_capacity_bytes():
    try:
        cap = int(getattr(pltpu.get_tpu_info(), "vmem_capacity_bytes", 0))
        if cap > 0:
            return cap
    except Exception:
        pass
    return 64 << 20          # conservative default (v7x per-core physical VMEM)


def _pick_tiles(B, C, step_bytes_fn, target_bytes):
    """Largest (TB, TC) divisor pair whose per-step blocks fit the VMEM target,
    preferring >= 2 grid steps so both v7x TensorCores get work."""
    best_key, best = None, (1, 1)
    for tb in _divisors(B):
        for tc in _divisors(C):
            blk = step_bytes_fn(tb, tc)
            if blk > target_bytes and (tb, tc) != (1, 1):
                continue
            steps = (B // tb) * (C // tc)
            key = (blk <= target_bytes, steps >= 2 or B * C == 1, blk, -steps)
            if best_key is None or key > best_key:
                best_key, best = key, (tb, tc)
    return best


# ---------------------------------------------------------------------------
# Public wrapper (matches PyTorch SPPLayer.forward)
# ---------------------------------------------------------------------------

def spp_layer(x, num_levels, pool_type='max_pool'):
    B, C, H, W = x.shape
    geoms = _pyramid_geometry(H, W, num_levels)
    itemsize = x.dtype.itemsize

    nested = _is_nested(geoms, H, W)
    ks_f = geoms[-1][0]

    if nested:
        # Single windowed view -> x is streamed from HBM exactly once.
        nh_f, nw_f = H // ks_f, W // ks_f
        xv = x
        if nh_f * ks_f != H or nw_f * ks_f != W:      # floor-pool crop (rare)
            xv = x[:, :, :nh_f * ks_f, :nw_f * ks_f]
        inputs = [xv.reshape(B, C, nh_f, ks_f, nw_f, ks_f)]   # free view if no crop
        in_block_tails = [(nh_f, ks_f, nw_f, ks_f)]
    else:
        # Fallback: one windowed view per level (x is read num_levels times).
        # TODO(synk): single-pass path for non-nested pyramid geometries.
        inputs, in_block_tails = [], []
        for (ks, nh, nw) in geoms:
            xv = x if (nh * ks == H and nw * ks == W) else x[:, :, :nh * ks, :nw * ks]
            inputs.append(xv.reshape(B, C, nh, ks, nw, ks))
            in_block_tails.append((nh, ks, nw, ks))

    out_tails = [(nh, nw) for (_, nh, nw) in geoms]

    def step_bytes(tb, tc):
        n = sum(_padded_bytes((tb, tc) + t, itemsize) for t in in_block_tails)
        n += sum(_padded_bytes((tb, tc) + t, itemsize) for t in out_tails)
        return n

    vmem_cap = _vmem_capacity_bytes()
    TB, TC = _pick_tiles(B, C, step_bytes, target_bytes=vmem_cap // 8)

    # Double-buffered blocks + slack for in-kernel temporaries, capped well
    # below physical VMEM.
    # TODO(synk): spatial (H*W) tiling for inputs whose single (b, c) slab
    # still exceeds the VMEM budget.
    vmem_limit = int(min(vmem_cap * 4 // 5,
                         max(32 << 20, 4 * step_bytes(TB, TC) + (2 << 20))))

    kernel = functools.partial(_spp_kernel, geoms=geoms, pool_type=pool_type,
                               nested=nested, ks_f=ks_f)

    in_specs = [pl.BlockSpec((TB, TC) + t, lambda b, c: (b, c, 0, 0, 0, 0))
                for t in in_block_tails]
    out_specs = tuple(pl.BlockSpec((TB, TC) + t, lambda b, c: (b, c, 0, 0))
                      for t in out_tails)
    out_shape = tuple(jax.ShapeDtypeStruct((B, C) + t, x.dtype) for t in out_tails)

    flops = 2 * B * C * sum(nh * nw * ks * ks for (ks, nh, nw) in geoms)
    bytes_accessed = (sum(int(a.size) for a in inputs)
                      + B * C * sum(nh * nw for (_, nh, nw) in geoms)) * itemsize

    outs = pl.pallas_call(
        kernel,
        out_shape=out_shape,
        grid=(B // TB, C // TC),
        in_specs=in_specs,
        out_specs=out_specs,
        compiler_params=pltpu.CompilerParams(
            dimension_semantics=("parallel", "parallel"),
            vmem_limit_bytes=vmem_limit),
        cost_estimate=pl.CostEstimate(flops=flops, transcendentals=0,
                                      bytes_accessed=bytes_accessed),
    )(*inputs)

    # PyTorch ordering: per level, .view(bs, -1) of (B, C, nh, nw) is C-major,
    # which is exactly the contiguous reshape of our (B, C, nh, nw) outputs.
    pieces = [o.reshape(B, C * nh * nw) for o, (_, nh, nw) in zip(outs, geoms)]
    return pieces[0] if len(pieces) == 1 else jnp.concatenate(pieces, axis=-1)


# ---------------------------------------------------------------------------
# Pure-JAX reference (F.max_pool2d / F.avg_pool2d + view + cat)
# ---------------------------------------------------------------------------

def _spp_reference(x, num_levels, pool_type='max_pool'):
    B, C, H, W = x.shape
    outs = []
    for i in range(num_levels):
        ks = H // (2 ** i)
        nh, nw = (H - ks) // ks + 1, (W - ks) // ks + 1
        xc = x[:, :, :nh * ks, :nw * ks].reshape(B, C, nh, ks, nw, ks)
        p = xc.max(axis=(3, 5)) if pool_type == 'max_pool' else xc.mean(axis=(3, 5))
        outs.append(p.reshape(B, -1))
    return jnp.concatenate(outs, axis=-1)


if __name__ == "__main__":
    key = jax.random.PRNGKey(0)
    # SPPLayer has no learnable parameters; only the input is needed.
    x = jax.random.normal(key, (2, 4, 16, 16), dtype=jnp.float32)
    num_levels = 3

    for pool_type in ("max_pool", "avg_pool"):
        y = jax.block_until_ready(spp_layer(x, num_levels, pool_type))
        y_ref = _spp_reference(x, num_levels, pool_type)
        assert y.shape == (2, 4 * (1 + 4 + 16)), y.shape
        assert jnp.allclose(y, y_ref, atol=1e-5, rtol=1e-5), f"mismatch: {pool_type}"

    # Non-nested geometry exercises the per-level fallback path (+ floor crop).
    x2 = jax.random.normal(jax.random.PRNGKey(1), (2, 4, 18, 18), dtype=jnp.float32)
    y2 = jax.block_until_ready(spp_layer(x2, 3, "max_pool"))
    y2_ref = _spp_reference(x2, 3, "max_pool")
    assert y2.shape == y2_ref.shape and jnp.allclose(y2, y2_ref, atol=1e-5, rtol=1e-5)

    print("KERNEL_OK")
</pallas_src>

<mosaic_0001>
module attributes {stable_mosaic.version = 11 : i64} {
  func.func @_spp_kernel(%arg0: i32, %arg1: i32, %arg2: memref<1x4x4x4x4x4xf32, #tpu.memory_space<vmem>>, %arg3: memref<1x4x1x1xf32, #tpu.memory_space<vmem>>, %arg4: memref<1x4x2x2xf32, #tpu.memory_space<vmem>>, %arg5: memref<1x4x4x4xf32, #tpu.memory_space<vmem>>) attributes {dimension_semantics = [#tpu.dimension_semantics<parallel>, #tpu.dimension_semantics<parallel>], iteration_bounds = array<i64: 2, 1>, scalar_prefetch = 0 : i64, scratch_operands = 0 : i64, tpu.core_type = #tpu.core_type<tc>, window_params = [{transform_indices = @transform_0, window_bounds = array<i64: 1, 4, 4, 4, 4, 4>}, {transform_indices = @transform_1, window_bounds = array<i64: 1, 4, 1, 1>}, {transform_indices = @transform_2, window_bounds = array<i64: 1, 4, 2, 2>}, {transform_indices = @transform_3, window_bounds = array<i64: 1, 4, 4, 4>}]} {
    %c0 = arith.constant 0 : index
    %c0_0 = arith.constant 0 : index
    %c0_1 = arith.constant 0 : index
    %c0_2 = arith.constant 0 : index
    %c0_3 = arith.constant 0 : index
    %c0_4 = arith.constant 0 : index
    %0 = vector.load %arg2[%c0, %c0_0, %c0_1, %c0_2, %c0_3, %c0_4] : memref<1x4x4x4x4x4xf32, #tpu.memory_space<vmem>>, vector<1x4x4x4x4x4xf32>
    %1 = vector.shape_cast %0 : vector<1x4x4x4x4x4xf32> to vector<1x4x1x4x4x1x4x4xf32>
    %cst = arith.constant dense<0xFF800000> : vector<1x4x1x4x4x1x4xf32>
    %2 = vector.multi_reduction <maximumf>, %1, %cst [7] : vector<1x4x1x4x4x1x4x4xf32> to vector<1x4x1x4x4x1x4xf32>
    %cst_5 = arith.constant dense<0xFF800000> : vector<1x4x1x4x4x1xf32>
    %3 = vector.multi_reduction <maximumf>, %2, %cst_5 [6] : vector<1x4x1x4x4x1x4xf32> to vector<1x4x1x4x4x1xf32>
    %cst_6 = arith.constant dense<0xFF800000> : vector<1x4x1x4x1xf32>
    %4 = vector.multi_reduction <maximumf>, %3, %cst_6 [4] : vector<1x4x1x4x4x1xf32> to vector<1x4x1x4x1xf32>
    %cst_7 = arith.constant dense<0xFF800000> : vector<1x4x1x1xf32>
    %5 = vector.multi_reduction <maximumf>, %4, %cst_7 [3] : vector<1x4x1x4x1xf32> to vector<1x4x1x1xf32>
    %c0_8 = arith.constant 0 : index
    %c0_9 = arith.constant 0 : index
    %c0_10 = arith.constant 0 : index
    %c0_11 = arith.constant 0 : index
    %6 = vector.load %arg3[%c0_8, %c0_9, %c0_10, %c0_11] : memref<1x4x1x1xf32, #tpu.memory_space<vmem>>, vector<1x4x1x1xf32>
    tpu.vector_store %arg3[%c0_8, %c0_9, %c0_10, %c0_11], %5 {strides = array<i32>} : memref<1x4x1x1xf32, #tpu.memory_space<vmem>>, vector<1x4x1x1xf32>,
    %7 = vector.shape_cast %0 : vector<1x4x4x4x4x4xf32> to vector<1x4x2x2x4x2x2x4xf32>
    %cst_12 = arith.constant dense<0xFF800000> : vector<1x4x2x2x4x2x2xf32>
    %8 = vector.multi_reduction <maximumf>, %7, %cst_12 [7] : vector<1x4x2x2x4x2x2x4xf32> to vector<1x4x2x2x4x2x2xf32>
    %cst_13 = arith.constant dense<0xFF800000> : vector<1x4x2x2x4x2xf32>
    %9 = vector.multi_reduction <maximumf>, %8, %cst_13 [6] : vector<1x4x2x2x4x2x2xf32> to vector<1x4x2x2x4x2xf32>
    %cst_14 = arith.constant dense<0xFF800000> : vector<1x4x2x2x2xf32>
    %10 = vector.multi_reduction <maximumf>, %9, %cst_14 [4] : vector<1x4x2x2x4x2xf32> to vector<1x4x2x2x2xf32>
    %cst_15 = arith.constant dense<0xFF800000> : vector<1x4x2x2xf32>
    %11 = vector.multi_reduction <maximumf>, %10, %cst_15 [3] : vector<1x4x2x2x2xf32> to vector<1x4x2x2xf32>
    %c0_16 = arith.constant 0 : index
    %c0_17 = arith.constant 0 : index
    %c0_18 = arith.constant 0 : index
    %c0_19 = arith.constant 0 : index
    %12 = vector.load %arg4[%c0_16, %c0_17, %c0_18, %c0_19] : memref<1x4x2x2xf32, #tpu.memory_space<vmem>>, vector<1x4x2x2xf32>
    tpu.vector_store %arg4[%c0_16, %c0_17, %c0_18, %c0_19], %11 {strides = array<i32>} : memref<1x4x2x2xf32, #tpu.memory_space<vmem>>, vector<1x4x2x2xf32>,
    %cst_20 = arith.constant dense<0xFF800000> : vector<1x4x4x4x4xf32>
    %13 = vector.multi_reduction <maximumf>, %0, %cst_20 [5] : vector<1x4x4x4x4x4xf32> to vector<1x4x4x4x4xf32>
    %cst_21 = arith.constant dense<0xFF800000> : vector<1x4x4x4xf32>
    %14 = vector.multi_reduction <maximumf>, %13, %cst_21 [3] : vector<1x4x4x4x4xf32> to vector<1x4x4x4xf32>
    %c0_22 = arith.constant 0 : index
    %c0_23 = arith.constant 0 : index
    %c0_24 = arith.constant 0 : index
    %c0_25 = arith.constant 0 : index
    %15 = vector.load %arg5[%c0_22, %c0_23, %c0_24, %c0_25] : memref<1x4x4x4xf32, #tpu.memory_space<vmem>>, vector<1x4x4x4xf32>
    tpu.vector_store %arg5[%c0_22, %c0_23, %c0_24, %c0_25], %14 {strides = array<i32>} : memref<1x4x4x4xf32, #tpu.memory_space<vmem>>, vector<1x4x4x4xf32>,
    return
  }
  func.func @transform_0(%arg0: i32, %arg1: i32) -> (i32, i32, i32, i32, i32, i32) {
    %c0_i32 = arith.constant 0 : i32
    %c0_i32_0 = arith.constant 0 : i32
    %c0_i32_1 = arith.constant 0 : i32
    %c0_i32_2 = arith.constant 0 : i32
    %c0_i32_3 = arith.constant 0 : i32
    return %arg0, %arg1, %c0_i32, %c0_i32_0, %c0_i32_1, %c0_i32_2 : i32, i32, i32, i32, i32, i32
  }
  func.func @transform_1(%arg0: i32, %arg1: i32) -> (i32, i32, i32, i32) {
    %c0_i32 = arith.constant 0 : i32
    %c0_i32_0 = arith.constant 0 : i32
    %c0_i32_1 = arith.constant 0 : i32
    return %arg0, %arg1, %c0_i32, %c0_i32_0 : i32, i32, i32, i32
  }
  func.func @transform_2(%arg0: i32, %arg1: i32) -> (i32, i32, i32, i32) {
    %c0_i32 = arith.constant 0 : i32
    %c0_i32_0 = arith.constant 0 : i32
    %c0_i32_1 = arith.constant 0 : i32
    return %arg0, %arg1, %c0_i32, %c0_i32_0 : i32, i32, i32, i32
  }
  func.func @transform_3(%arg0: i32, %arg1: i32) -> (i32, i32, i32, i32) {
    %c0_i32 = arith.constant 0 : i32
    %c0_i32_0 = arith.constant 0 : i32
    %c0_i32_1 = arith.constant 0 : i32
    return %arg0, %arg1, %c0_i32, %c0_i32_0 : i32, i32, i32, i32
  }
}

</mosaic_0001>

<llo_original>
// kernel: tpu_custom_call.1
$region0: #{tpu_custom_call.1}
  #allocation0 [shape = 'u32[]', space=smem, size = 0x4, offset = 0x4, fixed_abs, tag = 'smem constant byte address 0x4 - core index']
  #allocation1 [shape = 'u32[144,128]{1,0:T(1,128)}', space=vmem, size = 0x12000, scoped, tag = 'internal scratch']
  %s0 = inlined_call_operand.hbm [shape: f32[2,4,4,4,4,4], index: 0, kind: input, shape index: {}]
  %s1 = inlined_call_operand.vmem [shape: f32[2,4,1,1], index: 1, kind: output, shape index: {0}]
  %s2 = inlined_call_operand.vmem [shape: f32[2,4,2,2], index: 2, kind: output, shape index: {1}]
  %s3 = inlined_call_operand.hbm [shape: f32[2,4,4,4], index: 3, kind: output, shape index: {2}]
  %4 = xla_tuple %s1, %s2, %s3
  %s5 = sld [smem:[#allocation0]]
  $region57: #{tpu_custom_call.1} parent=0
    _
  %s7 = ssub.s32 1, %s5
  %s8 = scalar_select 0, %s7, %s5
  $region1: #{tpu_custom_call.1} parent=0
    #allocation2 [shape = 'u8[262144]{0}', space=vmem, size = 0x40000, scoped, tag = 'input window, operand 0']
    #allocation3 [shape = 's32[2]{0}', space=sflag, size = 0x8, scoped, tag = 'scoped memory for tpu_custom_call.1']
    #allocation4 [shape = 's32[2]{0}', space=sflag, size = 0x8, scoped, tag = 'scoped memory for tpu_custom_call.1']
    #allocation5 [shape = 'u8[16384]{0}', space=vmem, size = 0x4000, scoped, tag = 'output window, operand 2']
    %9 = vsyncpa [#allocation3], 0
    %s10 = scalar_lea.sflag [#allocation3], 1
    %11 = vsyncpa %s10, 0
    %12 = vsyncpa [#allocation4], 0
    %s13 = scalar_lea.sflag [#allocation4], 1
    %14 = vsyncpa %s13, 0
    loop: start=0, step=1, limit=4
    $region2: #{tpu_custom_call.1} parent=1 // loop_pre_header
      _
    $region3: #{tpu_custom_call.1} parent=1 // loop_header
      %s16 = sphi 0, %s20
      %p17 = scmp.ge.s32.totalorder %s16, 4
      %s23 = sphi 0, %s35
      %s24 = sphi 0, %s31
      %s25 = sphi 0, %s23
      %s26 = sphi 0, %s24
      %s27 = sphi 0, %s25
      %s28 = sphi 0, %s26
      %s40 = sphi 0, %s42
      %s43 = sphi 0, %s40
      %s44 = sphi 0, %s43
      %s60 = sphi 0, %s44
      %s68 = sphi 0, %s70
      %s71 = sphi 0, %s68
      %s72 = sphi 0, %s71
      %s88 = sphi 0, %s72
      %s96 = sphi 0, %s98
      %s99 = sphi 0, %s96
      %s100 = sphi 0, %s99
      %s116 = sphi 0, %s100
      %s124 = sphi 0, %s126
      %s127 = sphi 0, %s124
      %s128 = sphi 0, %s127
      %s144 = sphi 0, %s128
    $region4: #{tpu_custom_call.1} parent=1 // loop_header_branch
      %19 = sbr.rel (%p17) target = $region8
    $region5: #{tpu_custom_call.1} parent=1 // loop_body
      %s21 = ssub.s32 %s16, 1
      %s22 = ssub.s32 %s16, 2
      %s29 = sadd.s32 1, %s24
      %p30 = scmp.ge.s32.totalorder %s29, 1
      %s31 = scalar_select %p30, 0, %s29
      %s32 = sadd.s32 1, %s23
      %s33 = scalar_select %p30, %s32, %s23
      %p34 = scmp.ge.s32.totalorder %s33, 2
      %s35 = scalar_select %p34, 0, %s33
      %s36 = ssub.s32 %s23, %s35
      %s37 = ssub.s32 %s24, %s31
      %s38 = sor.u32 %s36, %s37
      %p39 = scmp.eq.s32.totalorder %s38, 0
      %s41 = sadd.s32 %s40, 1
      %s42 = scalar_select %p39, %s40, %s41
      %p45 = pneg %p39
      %p46 = scmp.eq.s32.totalorder %s16, 1
      %p47 = por %p45, %p46
      %p48 = scmp.ne.s32.totalorder %s40, %s43
      %p49 = scmp.eq.s32.totalorder %s16, 0
      %p50 = por %p48, %p49
      %p51 = scmp.ne.s32.totalorder %s40, %s43
      %p52 = scmp.eq.s32.totalorder %s21, 1
      %p53 = por %p51, %p52
      %p54 = scmp.ne.s32.totalorder %s43, %s44
      %p55 = scmp.eq.s32.totalorder %s21, 0
      %p56 = por %p54, %p55
      %p57 = scmp.ne.s32.totalorder %s43, %s44
      %p58 = scmp.eq.s32.totalorder %s22, 1
      %p59 = por %p57, %p58
      %p61 = scmp.ne.s32.totalorder %s44, %s60
      %p62 = scmp.eq.s32.totalorder %s22, 0
      %p63 = por %p61, %p62
      %s64 = ssub.s32 %s23, %s35
      %s65 = ssub.s32 %s24, %s31
      %s66 = sor.u32 %s64, %s65
      %p67 = scmp.eq.s32.totalorder %s66, 0
      %s69 = sadd.s32 %s68, 1
      %s70 = scalar_select %p67, %s68, %s69
      %p73 = pneg %p67
      %p74 = scmp.eq.s32.totalorder %s16, 1
      %p75 = por %p73, %p74
      %p76 = scmp.ne.s32.totalorder %s68, %s71
      %p77 = scmp.eq.s32.totalorder %s16, 0
      %p78 = por %p76, %p77
      %p79 = scmp.ne.s32.totalorder %s68, %s71
      %p80 = scmp.eq.s32.totalorder %s21, 1
      %p81 = por %p79, %p80
      %p82 = scmp.ne.s32.totalorder %s71, %s72
      %p83 = scmp.eq.s32.totalorder %s21, 0
      %p84 = por %p82, %p83
      %p85 = scmp.ne.s32.totalorder %s71, %s72
      %p86 = scmp.eq.s32.totalorder %s22, 1
      %p87 = por %p85, %p86
      %p89 = scmp.ne.s32.totalorder %s72, %s88
      %p90 = scmp.eq.s32.totalorder %s22, 0
      %p91 = por %p89, %p90
      %s92 = ssub.s32 %s23, %s35
      %s93 = ssub.s32 %s24, %s31
      %s94 = sor.u32 %s92, %s93
      %p95 = scmp.eq.s32.totalorder %s94, 0
      %s97 = sadd.s32 %s96, 1
      %s98 = scalar_select %p95, %s96, %s97
      %p101 = pneg %p95
      %p102 = scmp.eq.s32.totalorder %s16, 1
      %p103 = por %p101, %p102
      %p104 = scmp.ne.s32.totalorder %s96, %s99
      %p105 = scmp.eq.s32.totalorder %s16, 0
      %p106 = por %p104, %p105
      %p107 = scmp.ne.s32.totalorder %s96, %s99
      %p108 = scmp.eq.s32.totalorder %s21, 1
      %p109 = por %p107, %p108
      %p110 = scmp.ne.s32.totalorder %s99, %s100
      %p111 = scmp.eq.s32.totalorder %s21, 0
      %p112 = por %p110, %p111
      %p113 = scmp.ne.s32.totalorder %s99, %s100
      %p114 = scmp.eq.s32.totalorder %s22, 1
      %p115 = por %p113, %p114
      %p117 = scmp.ne.s32.totalorder %s100, %s116
      %p118 = scmp.eq.s32.totalorder %s22, 0
      %p119 = por %p117, %p118
      %s120 = ssub.s32 %s23, %s35
      %s121 = ssub.s32 %s24, %s31
      %s122 = sor.u32 %s120, %s121
      %p123 = scmp.eq.s32.totalorder %s122, 0
      %s125 = sadd.s32 %s124, 1
      %s126 = scalar_select %p123, %s124, %s125
      %p129 = pneg %p123
      %p130 = scmp.eq.s32.totalorder %s16, 1
      %p131 = por %p129, %p130
      %p132 = scmp.ne.s32.totalorder %s124, %s127
      %p133 = scmp.eq.s32.totalorder %s16, 0
      %p134 = por %p132, %p133
      %p135 = scmp.ne.s32.totalorder %s124, %s127
      %p136 = scmp.eq.s32.totalorder %s21, 1
      %p137 = por %p135, %p136
      %p138 = scmp.ne.s32.totalorder %s127, %s128
      %p139 = scmp.eq.s32.totalorder %s21, 0
      %p140 = por %p138, %p139
      %p141 = scmp.ne.s32.totalorder %s127, %s128
      %p142 = scmp.eq.s32.totalorder %s22, 1
      %p143 = por %p141, %p142
      %p145 = scmp.ne.s32.totalorder %s128, %s144
      %p146 = scmp.eq.s32.totalorder %s22, 0
      %p147 = por %p145, %p146
      %p148 = scmp.le.s32.totalorder 1, %s16
      %p149 = scmp.lt.s32.totalorder %s16, 3
      %p150 = pnand %p148, %p149
      %p151 = pneg %p150
      // Predicated region
      $region9: #{tpu_custom_call.1} parent=5 // pred_check
        _
      $region10: #{tpu_custom_call.1} parent=5 // pred_check_branch
        %153 = sbr.rel (%p150) target = $region12
      $region11: #{tpu_custom_call.1} parent=5 // pred_region
        %s154 = ssub.s32 %s16, 1
      $region12: #{tpu_custom_call.1} parent=5 // pred_fallthru
        _
      %p155 = scmp.lt.s32.totalorder %s16, 2
      // Predicated region
      $region13: #{tpu_custom_call.1} parent=5 // pred_check
        %p156 = pneg %p155
      $region14: #{tpu_custom_call.1} parent=5 // pred_check_branch
        %158 = sbr.rel (%p156) target = $region16
      $region15: #{tpu_custom_call.1} parent=5 // pred_region
        // Predicated region
        $region17: #{tpu_custom_call.1} parent=15 // pred_check
          %p159 = pneg %p50
        $region18: #{tpu_custom_call.1} parent=15 // pred_check_branch
          %161 = sbr.rel (%p159) target = $region20
        $region19: #{tpu_custom_call.1} parent=15 // pred_region
          %s162 = sand.u32 %s40, 1
          %s163 = scalar_lea.sflag [#allocation3], %s162
          %s164 = sand.u32 %s40, 1
          %s165 = smul.addr %s164, 256
          %s166 = scalar_lea.vmem [#allocation2], %s165
          %s167 = smul.u32 4, %s24
          %s169 = ssub.s32 4096, 4096
          %170 = vsyncadd %s163, %s169
          %s171 = smul.addr %s167, 16
          %s172 = smul.addr %s23, 64
          %s173 = sadd.s32 %s171, %s172
          %s174 = smul.addr %s173, 64
          %s175 = scalar_lea.hbm %s0, %s174
          %s176 = sshll.u32 %s166, 4
          %s177 = int_to_ptr.vmem [resolvable:$true] %s176
          %182 = dma.hbm_to_vmem [thread:$0]  %s175, 4096, %s177, %s163, 64, 64, 4
        $region20: #{tpu_custom_call.1} parent=15 // pred_fallthru
          _
      $region16: #{tpu_custom_call.1} parent=5 // pred_fallthru
        _
      %p183 = scmp.le.s32.totalorder 1, %s16
      %p184 = scmp.lt.s32.totalorder %s16, 3
      %p185 = pnand %p183, %p184
      %p186 = pneg %p185
      // Predicated region
      $region21: #{tpu_custom_call.1} parent=5 // pred_check
        _
      $region22: #{tpu_custom_call.1} parent=5 // pred_check_branch
        %188 = sbr.rel (%p185) target = $region24
      $region23: #{tpu_custom_call.1} parent=5 // pred_region
        %s189 = ssub.s32 %s16, 1
        %s190 = sand.u32 %s43, 1
        %s191 = scalar_lea.sflag [#allocation3], %s190
        %s192 = sand.u32 %s43, 1
        %s193 = smul.addr %s192, 256
        %s194 = scalar_lea.vmem [#allocation2], %s193
        // Predicated region
        $region25: #{tpu_custom_call.1} parent=23 // pred_check
          %p195 = pneg %p56
        $region26: #{tpu_custom_call.1} parent=23 // pred_check_branch
          %197 = sbr.rel (%p195) target = $region28
        $region27: #{tpu_custom_call.1} parent=23 // pred_region
          %198 = dma.done %s191, 4096
        $region28: #{tpu_custom_call.1} parent=23 // pred_fallthru
          _
        %s199 = sand.u32 %s43, 1
        %s200 = scalar_lea.sflag [#allocation3], %s199
        %s201 = sand.u32 %s43, 1
        %s202 = smul.addr %s201, 256
        %s203 = scalar_lea.vmem [#allocation2], %s202
        %p204 = pneg %p56
        %p205 = pneg %p53
        %p206 = pneg %p84
        %p207 = pneg %p81
        %s208 = smul.u32 4, %s26
        %p209 = scmp.lt.s32.totalorder %s25, 1
        %s210 = scalar_select %p209, %s25, 1
        %p211 = scmp.lt.s32.totalorder %s208, 3
        %s212 = scalar_select %p211, %s208, 3
        %s213 = smul.addr %s210, 4
        %s214 = sadd.s32 %s212, %s213
        %s215 = scalar_lea.vmem %s1, %s214
        %p216 = pneg %p112
        %p217 = pneg %p109
        %s218 = smul.u32 4, %s26
        %p219 = scmp.lt.s32.totalorder %s25, 1
        %s220 = scalar_select %p219, %s25, 1
        %p221 = scmp.lt.s32.totalorder %s218, 3
        %s222 = scalar_select %p221, %s218, 3
        %s223 = smul.addr %s220, 4
        %s224 = sadd.s32 %s222, %s223
        %s225 = smul.addr %s224, 2
        %s226 = scalar_lea.vmem %s2, %s225
        %p227 = pneg %p140
        %p228 = pneg %p137
        %s229 = sand.u32 %s127, 1
        %s230 = scalar_lea.sflag [#allocation4], %s229
        %s231 = sand.u32 %s127, 1
        %s232 = smul.addr %s231, 16
        %s233 = scalar_lea.vmem [#allocation5], %s232
        %s234 = smul.u32 4, %s26
        %s235 = smul.u32 4, %s26
        %p236 = scmp.lt.s32.totalorder %s25, 1
        %s237 = scalar_select %p236, %s25, 1
        %p238 = scmp.lt.s32.totalorder %s235, 3
        %s239 = scalar_select %p238, %s235, 3
        %s240 = smul.addr %s237, 4
        %s241 = sadd.s32 %s239, %s240
        %s242 = scalar_lea.vmem %s1, %s241
        %s243 = smul.u32 4, %s26
        %s244 = smul.u32 4, %s26
        %p245 = scmp.lt.s32.totalorder %s25, 1
        %s246 = scalar_select %p245, %s25, 1
        %p247 = scmp.lt.s32.totalorder %s244, 3
        %s248 = scalar_select %p247, %s244, 3
        %s249 = smul.addr %s246, 4
        %s250 = sadd.s32 %s248, %s249
        %s251 = smul.addr %s250, 2
        %s252 = scalar_lea.vmem %s2, %s251
        %s253 = smul.u32 4, %s26
        %s254 = smul.u32 4, %s26
        %v255 = vld [vmem:[%s194] sm:$0xf]
        %v256 = vld [vmem:[%s194 + $0x4] sm:$0xf]
        %v257 = vld [vmem:[%s194 + $0x8] sm:$0xf]
        %v258 = vld [vmem:[%s194 + $0xc] sm:$0xf]
        %v259 = vld [vmem:[%s194 + $0x10] sm:$0xf]
        %v260 = vld [vmem:[%s194 + $0x14] sm:$0xf]
        %v261 = vld [vmem:[%s194 + $0x18] sm:$0xf]
        %v262 = vld [vmem:[%s194 + $0x1c] sm:$0xf]
        %v263 = vld [vmem:[%s194 + $0x20] sm:$0xf]
        %v264 = vld [vmem:[%s194 + $0x24] sm:$0xf]
        %v265 = vld [vmem:[%s194 + $0x28] sm:$0xf]
        %v266 = vld [vmem:[%s194 + $0x2c] sm:$0xf]
        %v267 = vld [vmem:[%s194 + $0x30] sm:$0xf]
        %v268 = vld [vmem:[%s194 + $0x34] sm:$0xf]
        %v269 = vld [vmem:[%s194 + $0x38] sm:$0xf]
        %v270 = vld [vmem:[%s194 + $0x3c] sm:$0xf]
        %v271 = vld [vmem:[%s194 + $0x40] sm:$0xf]
        %v272 = vld [vmem:[%s194 + $0x44] sm:$0xf]
        %v273 = vld [vmem:[%s194 + $0x48] sm:$0xf]
        %v274 = vld [vmem:[%s194 + $0x4c] sm:$0xf]
        %v275 = vld [vmem:[%s194 + $0x50] sm:$0xf]
        %v276 = vld [vmem:[%s194 + $0x54] sm:$0xf]
        %v277 = vld [vmem:[%s194 + $0x58] sm:$0xf]
        %v278 = vld [vmem:[%s194 + $0x5c] sm:$0xf]
        %v279 = vld [vmem:[%s194 + $0x60] sm:$0xf]
        %v280 = vld [vmem:[%s194 + $0x64] sm:$0xf]
        %v281 = vld [vmem:[%s194 + $0x68] sm:$0xf]
        %v282 = vld [vmem:[%s194 + $0x6c] sm:$0xf]
        %v283 = vld [vmem:[%s194 + $0x70] sm:$0xf]
        %v284 = vld [vmem:[%s194 + $0x74] sm:$0xf]
        %v285 = vld [vmem:[%s194 + $0x78] sm:$0xf]
        %v286 = vld [vmem:[%s194 + $0x7c] sm:$0xf]
        %v287 = vld [vmem:[%s194 + $0x80] sm:$0xf]
        %v288 = vld [vmem:[%s194 + $0x84] sm:$0xf]
        %v289 = vld [vmem:[%s194 + $0x88] sm:$0xf]
        %v290 = vld [vmem:[%s194 + $0x8c] sm:$0xf]
        %v291 = vld [vmem:[%s194 + $0x90] sm:$0xf]
        %v292 = vld [vmem:[%s194 + $0x94] sm:$0xf]
        %v293 = vld [vmem:[%s194 + $0x98] sm:$0xf]
        %v294 = vld [vmem:[%s194 + $0x9c] sm:$0xf]
        %v295 = vld [vmem:[%s194 + $0xa0] sm:$0xf]
        %v296 = vld [vmem:[%s194 + $0xa4] sm:$0xf]
        %v297 = vld [vmem:[%s194 + $0xa8] sm:$0xf]
        %v298 = vld [vmem:[%s194 + $0xac] sm:$0xf]
        %v299 = vld [vmem:[%s194 + $0xb0] sm:$0xf]
        %v300 = vld [vmem:[%s194 + $0xb4] sm:$0xf]
        %v301 = vld [vmem:[%s194 + $0xb8] sm:$0xf]
        %v302 = vld [vmem:[%s194 + $0xbc] sm:$0xf]
        %v303 = vld [vmem:[%s194 + $0xc0] sm:$0xf]
        %v304 = vld [vmem:[%s194 + $0xc4] sm:$0xf]
        %v305 = vld [vmem:[%s194 + $0xc8] sm:$0xf]
        %v306 = vld [vmem:[%s194 + $0xcc] sm:$0xf]
        %v307 = vld [vmem:[%s194 + $0xd0] sm:$0xf]
        %v308 = vld [vmem:[%s194 + $0xd4] sm:$0xf]
        %v309 = vld [vmem:[%s194 + $0xd8] sm:$0xf]
        %v310 = vld [vmem:[%s194 + $0xdc] sm:$0xf]
        %v311 = vld [vmem:[%s194 + $0xe0] sm:$0xf]
        %v312 = vld [vmem:[%s194 + $0xe4] sm:$0xf]
        %v313 = vld [vmem:[%s194 + $0xe8] sm:$0xf]
        %v314 = vld [vmem:[%s194 + $0xec] sm:$0xf]
        %v315 = vld [vmem:[%s194 + $0xf0] sm:$0xf]
        %v316 = vld [vmem:[%s194 + $0xf4] sm:$0xf]
        %v317 = vld [vmem:[%s194 + $0xf8] sm:$0xf]
        %v318 = vld [vmem:[%s194 + $0xfc] sm:$0xf]
        %vm319 = vcmask 27648
        %v320 = vsel %vm319, %v255, -inf
        %321 = vmax.xlane.f32.xlu0 %v320
        %v322 = vpop.xlane.xlu0 %321
        %v323 = vsel %vm319, %v256, -inf
        %324 = vmax.xlane.f32.xlu0 %v323
        %v325 = vpop.xlane.xlu0 %324
        %v326 = vsel %vm319, %v257, -inf
        %327 = vmax.xlane.f32.xlu0 %v326
        %v328 = vpop.xlane.xlu0 %327
        %v329 = vsel %vm319, %v258, -inf
        %330 = vmax.xlane.f32.xlu0 %v329
        %v331 = vpop.xlane.xlu0 %330
        %v332 = vsel %vm319, %v259, -inf
        %333 = vmax.xlane.f32.xlu0 %v332
        %v334 = vpop.xlane.xlu0 %333
        %v335 = vsel %vm319, %v260, -inf
        %336 = vmax.xlane.f32.xlu0 %v335
        %v337 = vpop.xlane.xlu0 %336
        %v338 = vsel %vm319, %v261, -inf
        %339 = vmax.xlane.f32.xlu0 %v338
        %v340 = vpop.xlane.xlu0 %339
        %v341 = vsel %vm319, %v262, -inf
        %342 = vmax.xlane.f32.xlu0 %v341
        %v343 = vpop.xlane.xlu0 %342
        %v344 = vsel %vm319, %v263, -inf
        %345 = vmax.xlane.f32.xlu0 %v344
        %v346 = vpop.xlane.xlu0 %345
        %v347 = vsel %vm319, %v264, -inf
        %348 = vmax.xlane.f32.xlu0 %v347
        %v349 = vpop.xlane.xlu0 %348
        %v350 = vsel %vm319, %v265, -inf
        %351 = vmax.xlane.f32.xlu0 %v350
        %v352 = vpop.xlane.xlu0 %351
        %v353 = vsel %vm319, %v266, -inf
        %354 = vmax.xlane.f32.xlu0 %v353
        %v355 = vpop.xlane.xlu0 %354
        %v356 = vsel %vm319, %v267, -inf
        %357 = vmax.xlane.f32.xlu0 %v356
        %v358 = vpop.xlane.xlu0 %357
        %v359 = vsel %vm319, %v268, -inf
        %360 = vmax.xlane.f32.xlu0 %v359
        %v361 = vpop.xlane.xlu0 %360
        %v362 = vsel %vm319, %v269, -inf
        %363 = vmax.xlane.f32.xlu0 %v362
        %v364 = vpop.xlane.xlu0 %363
        %v365 = vsel %vm319, %v270, -inf
        %366 = vmax.xlane.f32.xlu0 %v365
        %v367 = vpop.xlane.xlu0 %366
        %v368 = vsel %vm319, %v271, -inf
        %369 = vmax.xlane.f32.xlu0 %v368
        %v370 = vpop.xlane.xlu0 %369
        %v371 = vsel %vm319, %v272, -inf
        %372 = vmax.xlane.f32.xlu0 %v371
        %v373 = vpop.xlane.xlu0 %372
        %v374 = vsel %vm319, %v273, -inf
        %375 = vmax.xlane.f32.xlu0 %v374
        %v376 = vpop.xlane.xlu0 %375
        %v377 = vsel %vm319, %v274, -inf
        %378 = vmax.xlane.f32.xlu0 %v377
        %v379 = vpop.xlane.xlu0 %378
        %v380 = vsel %vm319, %v275, -inf
        %381 = vmax.xlane.f32.xlu0 %v380
        %v382 = vpop.xlane.xlu0 %381
        %v383 = vsel %vm319, %v276, -inf
        %384 = vmax.xlane.f32.xlu0 %v383
        %v385 = vpop.xlane.xlu0 %384
        %v386 = vsel %vm319, %v277, -inf
        %387 = vmax.xlane.f32.xlu0 %v386
        %v388 = vpop.xlane.xlu0 %387
        %v389 = vsel %vm319, %v278, -inf
        %390 = vmax.xlane.f32.xlu0 %v389
        %v391 = vpop.xlane.xlu0 %390
        %v392 = vsel %vm319, %v279, -inf
        %393 = vmax.xlane.f32.xlu0 %v392
        %v394 = vpop.xlane.xlu0 %393
        %v395 = vsel %vm319, %v280, -inf
        %396 = vmax.xlane.f32.xlu0 %v395
        %v397 = vpop.xlane.xlu0 %396
        %v398 = vsel %vm319, %v281, -inf
        %399 = vmax.xlane.f32.xlu0 %v398
        %v400 = vpop.xlane.xlu0 %399
        %v401 = vsel %vm319, %v282, -inf
        %402 = vmax.xlane.f32.xlu0 %v401
        %v403 = vpop.xlane.xlu0 %402
        %v404 = vsel %vm319, %v283, -inf
        %405 = vmax.xlane.f32.xlu0 %v404
        %v406 = vpop.xlane.xlu0 %405
        %v407 = vsel %vm319, %v284, -inf
        %408 = vmax.xlane.f32.xlu0 %v407
        %v409 = vpop.xlane.xlu0 %408
        %v410 = vsel %vm319, %v285, -inf
        %411 = vmax.xlane.f32.xlu0 %v410
        %v412 = vpop.xlane.xlu0 %411
        %v413 = vsel %vm319, %v286, -inf
        %414 = vmax.xlane.f32.xlu0 %v413
        %v415 = vpop.xlane.xlu0 %414
        %v416 = vsel %vm319, %v287, -inf
        %417 = vmax.xlane.f32.xlu0 %v416
        %v418 = vpop.xlane.xlu0 %417
        %v419 = vsel %vm319, %v288, -inf
        %420 = vmax.xlane.f32.xlu0 %v419
        %v421 = vpop.xlane.xlu0 %420
        %v422 = vsel %vm319, %v289, -inf
        %423 = vmax.xlane.f32.xlu0 %v422
        %v424 = vpop.xlane.xlu0 %423
        %v425 = vsel %vm319, %v290, -inf
        %426 = vmax.xlane.f32.xlu0 %v425
        %v427 = vpop.xlane.xlu0 %426
        %v428 = vsel %vm319, %v291, -inf
        %429 = vmax.xlane.f32.xlu0 %v428
        %v430 = vpop.xlane.xlu0 %429
        %v431 = vsel %vm319, %v292, -inf
        %432 = vmax.xlane.f32.xlu0 %v431
        %v433 = vpop.xlane.xlu0 %432
        %v434 = vsel %vm319, %v293, -inf
        %435 = vmax.xlane.f32.xlu0 %v434
        %v436 = vpop.xlane.xlu0 %435
        %v437 = vsel %vm319, %v294, -inf
        %438 = vmax.xlane.f32.xlu0 %v437
        %v439 = vpop.xlane.xlu0 %438
        %v440 = vsel %vm319, %v295, -inf
        %441 = vmax.xlane.f32.xlu0 %v440
        %v442 = vpop.xlane.xlu0 %441
        %v443 = vsel %vm319, %v296, -inf
        %444 = vmax.xlane.f32.xlu0 %v443
        %v445 = vpop.xlane.xlu0 %444
        %v446 = vsel %vm319, %v297, -inf
        %447 = vmax.xlane.f32.xlu0 %v446
        %v448 = vpop.xlane.xlu0 %447
        %v449 = vsel %vm319, %v298, -inf
        %450 = vmax.xlane.f32.xlu0 %v449
        %v451 = vpop.xlane.xlu0 %450
        %v452 = vsel %vm319, %v299, -inf
        %453 = vmax.xlane.f32.xlu0 %v452
        %v454 = vpop.xlane.xlu0 %453
        %v455 = vsel %vm319, %v300, -inf
        %456 = vmax.xlane.f32.xlu0 %v455
        %v457 = vpop.xlane.xlu0 %456
        %v458 = vsel %vm319, %v301, -inf
        %459 = vmax.xlane.f32.xlu0 %v458
        %v460 = vpop.xlane.xlu0 %459
        %v461 = vsel %vm319, %v302, -inf
        %462 = vmax.xlane.f32.xlu0 %v461
        %v463 = vpop.xlane.xlu0 %462
        %v464 = vsel %vm319, %v303, -inf
        %465 = vmax.xlane.f32.xlu0 %v464
        %v466 = vpop.xlane.xlu0 %465
        %v467 = vsel %vm319, %v304, -inf
        %468 = vmax.xlane.f32.xlu0 %v467
        %v469 = vpop.xlane.xlu0 %468
        %v470 = vsel %vm319, %v305, -inf
        %471 = vmax.xlane.f32.xlu0 %v470
        %v472 = vpop.xlane.xlu0 %471
        %v473 = vsel %vm319, %v306, -inf
        %474 = vmax.xlane.f32.xlu0 %v473
        %v475 = vpop.xlane.xlu0 %474
        %v476 = vsel %vm319, %v307, -inf
        %477 = vmax.xlane.f32.xlu0 %v476
        %v478 = vpop.xlane.xlu0 %477
        %v479 = vsel %vm319, %v308, -inf
        %480 = vmax.xlane.f32.xlu0 %v479
        %v481 = vpop.xlane.xlu0 %480
        %v482 = vsel %vm319, %v309, -inf
        %483 = vmax.xlane.f32.xlu0 %v482
        %v484 = vpop.xlane.xlu0 %483
        %v485 = vsel %vm319, %v310, -inf
        %486 = vmax.xlane.f32.xlu0 %v485
        %v487 = vpop.xlane.xlu0 %486
        %v488 = vsel %vm319, %v311, -inf
        %489 = vmax.xlane.f32.xlu0 %v488
        %v490 = vpop.xlane.xlu0 %489
        %v491 = vsel %vm319, %v312, -inf
        %492 = vmax.xlane.f32.xlu0 %v491
        %v493 = vpop.xlane.xlu0 %492
        %v494 = vsel %vm319, %v313, -inf
        %495 = vmax.xlane.f32.xlu0 %v494
        %v496 = vpop.xlane.xlu0 %495
        %v497 = vsel %vm319, %v314, -inf
        %498 = vmax.xlane.f32.xlu0 %v497
        %v499 = vpop.xlane.xlu0 %498
        %v500 = vsel %vm319, %v315, -inf
        %501 = vmax.xlane.f32.xlu0 %v500
        %v502 = vpop.xlane.xlu0 %501
        %v503 = vsel %vm319, %v316, -inf
        %504 = vmax.xlane.f32.xlu0 %v503
        %v505 = vpop.xlane.xlu0 %504
        %v506 = vsel %vm319, %v317, -inf
        %507 = vmax.xlane.f32.xlu0 %v506
        %v508 = vpop.xlane.xlu0 %507
        %v509 = vsel %vm319, %v318, -inf
        %510 = vmax.xlane.f32.xlu0 %v509
        %v511 = vpop.xlane.xlu0 %510
        %vm512 = vcmask 1043456
        %v513 = vsel %vm512, %v322, -inf
        %v514 = vrot.slane %v513, 4
        %v515 = vmax.f32 %v513, %v514
        %v516 = vrot.slane %v515, 2
        %v517 = vmax.f32 %v515, %v516
        %v518 = vrot.slane %v517, 1
        %v519 = vmax.f32 %v517, %v518
        %v520 = vsel %vm512, %v325, -inf
        %v521 = vrot.slane %v520, 4
        %v522 = vmax.f32 %v520, %v521
        %v523 = vrot.slane %v522, 2
        %v524 = vmax.f32 %v522, %v523
        %v525 = vrot.slane %v524, 1
        %v526 = vmax.f32 %v524, %v525
        %v527 = vsel %vm512, %v328, -inf
        %v528 = vrot.slane %v527, 4
        %v529 = vmax.f32 %v527, %v528
        %v530 = vrot.slane %v529, 2
        %v531 = vmax.f32 %v529, %v530
        %v532 = vrot.slane %v531, 1
        %v533 = vmax.f32 %v531, %v532
        %v534 = vsel %vm512, %v331, -inf
        %v535 = vrot.slane %v534, 4
        %v536 = vmax.f32 %v534, %v535
        %v537 = vrot.slane %v536, 2
        %v538 = vmax.f32 %v536, %v537
        %v539 = vrot.slane %v538, 1
        %v540 = vmax.f32 %v538, %v539
        %v541 = vsel %vm512, %v334, -inf
        %v542 = vrot.slane %v541, 4
        %v543 = vmax.f32 %v541, %v542
        %v544 = vrot.slane %v543, 2
        %v545 = vmax.f32 %v543, %v544
        %v546 = vrot.slane %v545, 1
        %v547 = vmax.f32 %v545, %v546
        %v548 = vsel %vm512, %v337, -inf
        %v549 = vrot.slane %v548, 4
        %v550 = vmax.f32 %v548, %v549
        %v551 = vrot.slane %v550, 2
        %v552 = vmax.f32 %v550, %v551
        %v553 = vrot.slane %v552, 1
        %v554 = vmax.f32 %v552, %v553
        %v555 = vsel %vm512, %v340, -inf
        %v556 = vrot.slane %v555, 4
        %v557 = vmax.f32 %v555, %v556
        %v558 = vrot.slane %v557, 2
        %v559 = vmax.f32 %v557, %v558
        %v560 = vrot.slane %v559, 1
        %v561 = vmax.f32 %v559, %v560
        %v562 = vsel %vm512, %v343, -inf
        %v563 = vrot.slane %v562, 4
        %v564 = vmax.f32 %v562, %v563
        %v565 = vrot.slane %v564, 2
        %v566 = vmax.f32 %v564, %v565
        %v567 = vrot.slane %v566, 1
        %v568 = vmax.f32 %v566, %v567
        %v569 = vsel %vm512, %v346, -inf
        %v570 = vrot.slane %v569, 4
        %v571 = vmax.f32 %v569, %v570
        %v572 = vrot.slane %v571, 2
        %v573 = vmax.f32 %v571, %v572
        %v574 = vrot.slane %v573, 1
        %v575 = vmax.f32 %v573, %v574
        %v576 = vsel %vm512, %v349, -inf
        %v577 = vrot.slane %v576, 4
        %v578 = vmax.f32 %v576, %v577
        %v579 = vrot.slane %v578, 2
        %v580 = vmax.f32 %v578, %v579
        %v581 = vrot.slane %v580, 1
        %v582 = vmax.f32 %v580, %v581
        %v583 = vsel %vm512, %v352, -inf
        %v584 = vrot.slane %v583, 4
        %v585 = vmax.f32 %v583, %v584
        %v586 = vrot.slane %v585, 2
        %v587 = vmax.f32 %v585, %v586
        %v588 = vrot.slane %v587, 1
        %v589 = vmax.f32 %v587, %v588
        %v590 = vsel %vm512, %v355, -inf
        %v591 = vrot.slane %v590, 4
        %v592 = vmax.f32 %v590, %v591
        %v593 = vrot.slane %v592, 2
        %v594 = vmax.f32 %v592, %v593
        %v595 = vrot.slane %v594, 1
        %v596 = vmax.f32 %v594, %v595
        %v597 = vsel %vm512, %v358, -inf
        %v598 = vrot.slane %v597, 4
        %v599 = vmax.f32 %v597, %v598
        %v600 = vrot.slane %v599, 2
        %v601 = vmax.f32 %v599, %v600
        %v602 = vrot.slane %v601, 1
        %v603 = vmax.f32 %v601, %v602
        %v604 = vsel %vm512, %v361, -inf
        %v605 = vrot.slane %v604, 4
        %v606 = vmax.f32 %v604, %v605
        %v607 = vrot.slane %v606, 2
        %v608 = vmax.f32 %v606, %v607
        %v609 = vrot.slane %v608, 1
        %v610 = vmax.f32 %v608, %v609
        %v611 = vsel %vm512, %v364, -inf
        %v612 = vrot.slane %v611, 4
        %v613 = vmax.f32 %v611, %v612
        %v614 = vrot.slane %v613, 2
        %v615 = vmax.f32 %v613, %v614
        %v616 = vrot.slane %v615, 1
        %v617 = vmax.f32 %v615, %v616
        %v618 = vsel %vm512, %v367, -inf
        %v619 = vrot.slane %v618, 4
        %v620 = vmax.f32 %v618, %v619
        %v621 = vrot.slane %v620, 2
        %v622 = vmax.f32 %v620, %v621
        %v623 = vrot.slane %v622, 1
        %v624 = vmax.f32 %v622, %v623
        %v625 = vsel %vm512, %v370, -inf
        %v626 = vrot.slane %v625, 4
        %v627 = vmax.f32 %v625, %v626
        %v628 = vrot.slane %v627, 2
        %v629 = vmax.f32 %v627, %v628
        %v630 = vrot.slane %v629, 1
        %v631 = vmax.f32 %v629, %v630
        %v632 = vsel %vm512, %v373, -inf
        %v633 = vrot.slane %v632, 4
        %v634 = vmax.f32 %v632, %v633
        %v635 = vrot.slane %v634, 2
        %v636 = vmax.f32 %v634, %v635
        %v637 = vrot.slane %v636, 1
        %v638 = vmax.f32 %v636, %v637
        %v639 = vsel %vm512, %v376, -inf
        %v640 = vrot.slane %v639, 4
        %v641 = vmax.f32 %v639, %v640
        %v642 = vrot.slane %v641, 2
        %v643 = vmax.f32 %v641, %v642
        %v644 = vrot.slane %v643, 1
        %v645 = vmax.f32 %v643, %v644
        %v646 = vsel %vm512, %v379, -inf
        %v647 = vrot.slane %v646, 4
        %v648 = vmax.f32 %v646, %v647
        %v649 = vrot.slane %v648, 2
        %v650 = vmax.f32 %v648, %v649
        %v651 = vrot.slane %v650, 1
        %v652 = vmax.f32 %v650, %v651
        %v653 = vsel %vm512, %v382, -inf
        %v654 = vrot.slane %v653, 4
        %v655 = vmax.f32 %v653, %v654
        %v656 = vrot.slane %v655, 2
        %v657 = vmax.f32 %v655, %v656
        %v658 = vrot.slane %v657, 1
        %v659 = vmax.f32 %v657, %v658
        %v660 = vsel %vm512, %v385, -inf
        %v661 = vrot.slane %v660, 4
        %v662 = vmax.f32 %v660, %v661
        %v663 = vrot.slane %v662, 2
        %v664 = vmax.f32 %v662, %v663
        %v665 = vrot.slane %v664, 1
        %v666 = vmax.f32 %v664, %v665
        %v667 = vsel %vm512, %v388, -inf
        %v668 = vrot.slane %v667, 4
        %v669 = vmax.f32 %v667, %v668
        %v670 = vrot.slane %v669, 2
        %v671 = vmax.f32 %v669, %v670
        %v672 = vrot.slane %v671, 1
        %v673 = vmax.f32 %v671, %v672
        %v674 = vsel %vm512, %v391, -inf
        %v675 = vrot.slane %v674, 4
        %v676 = vmax.f32 %v674, %v675
        %v677 = vrot.slane %v676, 2
        %v678 = vmax.f32 %v676, %v677
        %v679 = vrot.slane %v678, 1
        %v680 = vmax.f32 %v678, %v679
        %v681 = vsel %vm512, %v394, -inf
        %v682 = vrot.slane %v681, 4
        %v683 = vmax.f32 %v681, %v682
        %v684 = vrot.slane %v683, 2
        %v685 = vmax.f32 %v683, %v684
        %v686 = vrot.slane %v685, 1
        %v687 = vmax.f32 %v685, %v686
        %v688 = vsel %vm512, %v397, -inf
        %v689 = vrot.slane %v688, 4
        %v690 = vmax.f32 %v688, %v689
        %v691 = vrot.slane %v690, 2
        %v692 = vmax.f32 %v690, %v691
        %v693 = vrot.slane %v692, 1
        %v694 = vmax.f32 %v692, %v693
        %v695 = vsel %vm512, %v400, -inf
        %v696 = vrot.slane %v695, 4
        %v697 = vmax.f32 %v695, %v696
        %v698 = vrot.slane %v697, 2
        %v699 = vmax.f32 %v697, %v698
        %v700 = vrot.slane %v699, 1
        %v701 = vmax.f32 %v699, %v700
        %v702 = vsel %vm512, %v403, -inf
        %v703 = vrot.slane %v702, 4
        %v704 = vmax.f32 %v702, %v703
        %v705 = vrot.slane %v704, 2
        %v706 = vmax.f32 %v704, %v705
        %v707 = vrot.slane %v706, 1
        %v708 = vmax.f32 %v706, %v707
        %v709 = vsel %vm512, %v406, -inf
        %v710 = vrot.slane %v709, 4
        %v711 = vmax.f32 %v709, %v710
        %v712 = vrot.slane %v711, 2
        %v713 = vmax.f32 %v711, %v712
        %v714 = vrot.slane %v713, 1
        %v715 = vmax.f32 %v713, %v714
        %v716 = vsel %vm512, %v409, -inf
        %v717 = vrot.slane %v716, 4
        %v718 = vmax.f32 %v716, %v717
        %v719 = vrot.slane %v718, 2
        %v720 = vmax.f32 %v718, %v719
        %v721 = vrot.slane %v720, 1
        %v722 = vmax.f32 %v720, %v721
        %v723 = vsel %vm512, %v412, -inf
        %v724 = vrot.slane %v723, 4
        %v725 = vmax.f32 %v723, %v724
        %v726 = vrot.slane %v725, 2
        %v727 = vmax.f32 %v725, %v726
        %v728 = vrot.slane %v727, 1
        %v729 = vmax.f32 %v727, %v728
        %v730 = vsel %vm512, %v415, -inf
        %v731 = vrot.slane %v730, 4
        %v732 = vmax.f32 %v730, %v731
        %v733 = vrot.slane %v732, 2
        %v734 = vmax.f32 %v732, %v733
        %v735 = vrot.slane %v734, 1
        %v736 = vmax.f32 %v734, %v735
        %v737 = vsel %vm512, %v418, -inf
        %v738 = vrot.slane %v737, 4
        %v739 = vmax.f32 %v737, %v738
        %v740 = vrot.slane %v739, 2
        %v741 = vmax.f32 %v739, %v740
        %v742 = vrot.slane %v741, 1
        %v743 = vmax.f32 %v741, %v742
        %v744 = vsel %vm512, %v421, -inf
        %v745 = vrot.slane %v744, 4
        %v746 = vmax.f32 %v744, %v745
        %v747 = vrot.slane %v746, 2
        %v748 = vmax.f32 %v746, %v747
        %v749 = vrot.slane %v748, 1
        %v750 = vmax.f32 %v748, %v749
        %v751 = vsel %vm512, %v424, -inf
        %v752 = vrot.slane %v751, 4
        %v753 = vmax.f32 %v751, %v752
        %v754 = vrot.slane %v753, 2
        %v755 = vmax.f32 %v753, %v754
        %v756 = vrot.slane %v755, 1
        %v757 = vmax.f32 %v755, %v756
        %v758 = vsel %vm512, %v427, -inf
        %v759 = vrot.slane %v758, 4
        %v760 = vmax.f32 %v758, %v759
        %v761 = vrot.slane %v760, 2
        %v762 = vmax.f32 %v760, %v761
        %v763 = vrot.slane %v762, 1
        %v764 = vmax.f32 %v762, %v763
        %v765 = vsel %vm512, %v430, -inf
        %v766 = vrot.slane %v765, 4
        %v767 = vmax.f32 %v765, %v766
        %v768 = vrot.slane %v767, 2
        %v769 = vmax.f32 %v767, %v768
        %v770 = vrot.slane %v769, 1
        %v771 = vmax.f32 %v769, %v770
        %v772 = vsel %vm512, %v433, -inf
        %v773 = vrot.slane %v772, 4
        %v774 = vmax.f32 %v772, %v773
        %v775 = vrot.slane %v774, 2
        %v776 = vmax.f32 %v774, %v775
        %v777 = vrot.slane %v776, 1
        %v778 = vmax.f32 %v776, %v777
        %v779 = vsel %vm512, %v436, -inf
        %v780 = vrot.slane %v779, 4
        %v781 = vmax.f32 %v779, %v780
        %v782 = vrot.slane %v781, 2
        %v783 = vmax.f32 %v781, %v782
        %v784 = vrot.slane %v783, 1
        %v785 = vmax.f32 %v783, %v784
        %v786 = vsel %vm512, %v439, -inf
        %v787 = vrot.slane %v786, 4
        %v788 = vmax.f32 %v786, %v787
        %v789 = vrot.slane %v788, 2
        %v790 = vmax.f32 %v788, %v789
        %v791 = vrot.slane %v790, 1
        %v792 = vmax.f32 %v790, %v791
        %v793 = vsel %vm512, %v442, -inf
        %v794 = vrot.slane %v793, 4
        %v795 = vmax.f32 %v793, %v794
        %v796 = vrot.slane %v795, 2
        %v797 = vmax.f32 %v795, %v796
        %v798 = vrot.slane %v797, 1
        %v799 = vmax.f32 %v797, %v798
        %v800 = vsel %vm512, %v445, -inf
        %v801 = vrot.slane %v800, 4
        %v802 = vmax.f32 %v800, %v801
        %v803 = vrot.slane %v802, 2
        %v804 = vmax.f32 %v802, %v803
        %v805 = vrot.slane %v804, 1
        %v806 = vmax.f32 %v804, %v805
        %v807 = vsel %vm512, %v448, -inf
        %v808 = vrot.slane %v807, 4
        %v809 = vmax.f32 %v807, %v808
        %v810 = vrot.slane %v809, 2
        %v811 = vmax.f32 %v809, %v810
        %v812 = vrot.slane %v811, 1
        %v813 = vmax.f32 %v811, %v812
        %v814 = vsel %vm512, %v451, -inf
        %v815 = vrot.slane %v814, 4
        %v816 = vmax.f32 %v814, %v815
        %v817 = vrot.slane %v816, 2
        %v818 = vmax.f32 %v816, %v817
        %v819 = vrot.slane %v818, 1
        %v820 = vmax.f32 %v818, %v819
        %v821 = vsel %vm512, %v454, -inf
        %v822 = vrot.slane %v821, 4
        %v823 = vmax.f32 %v821, %v822
        %v824 = vrot.slane %v823, 2
        %v825 = vmax.f32 %v823, %v824
        %v826 = vrot.slane %v825, 1
        %v827 = vmax.f32 %v825, %v826
        %v828 = vsel %vm512, %v457, -inf
        %v829 = vrot.slane %v828, 4
        %v830 = vmax.f32 %v828, %v829
        %v831 = vrot.slane %v830, 2
        %v832 = vmax.f32 %v830, %v831
        %v833 = vrot.slane %v832, 1
        %v834 = vmax.f32 %v832, %v833
        %v835 = vsel %vm512, %v460, -inf
        %v836 = vrot.slane %v835, 4
        %v837 = vmax.f32 %v835, %v836
        %v838 = vrot.slane %v837, 2
        %v839 = vmax.f32 %v837, %v838
        %v840 = vrot.slane %v839, 1
        %v841 = vmax.f32 %v839, %v840
        %v842 = vsel %vm512, %v463, -inf
        %v843 = vrot.slane %v842, 4
        %v844 = vmax.f32 %v842, %v843
        %v845 = vrot.slane %v844, 2
        %v846 = vmax.f32 %v844, %v845
        %v847 = vrot.slane %v846, 1
        %v848 = vmax.f32 %v846, %v847
        %v849 = vsel %vm512, %v466, -inf
        %v850 = vrot.slane %v849, 4
        %v851 = vmax.f32 %v849, %v850
        %v852 = vrot.slane %v851, 2
        %v853 = vmax.f32 %v851, %v852
        %v854 = vrot.slane %v853, 1
        %v855 = vmax.f32 %v853, %v854
        %v856 = vsel %vm512, %v469, -inf
        %v857 = vrot.slane %v856, 4
        %v858 = vmax.f32 %v856, %v857
        %v859 = vrot.slane %v858, 2
        %v860 = vmax.f32 %v858, %v859
        %v861 = vrot.slane %v860, 1
        %v862 = vmax.f32 %v860, %v861
        %v863 = vsel %vm512, %v472, -inf
        %v864 = vrot.slane %v863, 4
        %v865 = vmax.f32 %v863, %v864
        %v866 = vrot.slane %v865, 2
        %v867 = vmax.f32 %v865, %v866
        %v868 = vrot.slane %v867, 1
        %v869 = vmax.f32 %v867, %v868
        %v870 = vsel %vm512, %v475, -inf
        %v871 = vrot.slane %v870, 4
        %v872 = vmax.f32 %v870, %v871
        %v873 = vrot.slane %v872, 2
        %v874 = vmax.f32 %v872, %v873
        %v875 = vrot.slane %v874, 1
        %v876 = vmax.f32 %v874, %v875
        %v877 = vsel %vm512, %v478, -inf
        %v878 = vrot.slane %v877, 4
        %v879 = vmax.f32 %v877, %v878
        %v880 = vrot.slane %v879, 2
        %v881 = vmax.f32 %v879, %v880
        %v882 = vrot.slane %v881, 1
        %v883 = vmax.f32 %v881, %v882
        %v884 = vsel %vm512, %v481, -inf
        %v885 = vrot.slane %v884, 4
        %v886 = vmax.f32 %v884, %v885
        %v887 = vrot.slane %v886, 2
        %v888 = vmax.f32 %v886, %v887
        %v889 = vrot.slane %v888, 1
        %v890 = vmax.f32 %v888, %v889
        %v891 = vsel %vm512, %v484, -inf
        %v892 = vrot.slane %v891, 4
        %v893 = vmax.f32 %v891, %v892
        %v894 = vrot.slane %v893, 2
        %v895 = vmax.f32 %v893, %v894
        %v896 = vrot.slane %v895, 1
        %v897 = vmax.f32 %v895, %v896
        %v898 = vsel %vm512, %v487, -inf
        %v899 = vrot.slane %v898, 4
        %v900 = vmax.f32 %v898, %v899
        %v901 = vrot.slane %v900, 2
        %v902 = vmax.f32 %v900, %v901
        %v903 = vrot.slane %v902, 1
        %v904 = vmax.f32 %v902, %v903
        %v905 = vsel %vm512, %v490, -inf
        %v906 = vrot.slane %v905, 4
        %v907 = vmax.f32 %v905, %v906
        %v908 = vrot.slane %v907, 2
        %v909 = vmax.f32 %v907, %v908
        %v910 = vrot.slane %v909, 1
        %v911 = vmax.f32 %v909, %v910
        %v912 = vsel %vm512, %v493, -inf
        %v913 = vrot.slane %v912, 4
        %v914 = vmax.f32 %v912, %v913
        %v915 = vrot.slane %v914, 2
        %v916 = vmax.f32 %v914, %v915
        %v917 = vrot.slane %v916, 1
        %v918 = vmax.f32 %v916, %v917
        %v919 = vsel %vm512, %v496, -inf
        %v920 = vrot.slane %v919, 4
        %v921 = vmax.f32 %v919, %v920
        %v922 = vrot.slane %v921, 2
        %v923 = vmax.f32 %v921, %v922
        %v924 = vrot.slane %v923, 1
        %v925 = vmax.f32 %v923, %v924
        %v926 = vsel %vm512, %v499, -inf
        %v927 = vrot.slane %v926, 4
        %v928 = vmax.f32 %v926, %v927
        %v929 = vrot.slane %v928, 2
        %v930 = vmax.f32 %v928, %v929
        %v931 = vrot.slane %v930, 1
        %v932 = vmax.f32 %v930, %v931
        %v933 = vsel %vm512, %v502, -inf
        %v934 = vrot.slane %v933, 4
        %v935 = vmax.f32 %v933, %v934
        %v936 = vrot.slane %v935, 2
        %v937 = vmax.f32 %v935, %v936
        %v938 = vrot.slane %v937, 1
        %v939 = vmax.f32 %v937, %v938
        %v940 = vsel %vm512, %v505, -inf
        %v941 = vrot.slane %v940, 4
        %v942 = vmax.f32 %v940, %v941
        %v943 = vrot.slane %v942, 2
        %v944 = vmax.f32 %v942, %v943
        %v945 = vrot.slane %v944, 1
        %v946 = vmax.f32 %v944, %v945
        %v947 = vsel %vm512, %v508, -inf
        %v948 = vrot.slane %v947, 4
        %v949 = vmax.f32 %v947, %v948
        %v950 = vrot.slane %v949, 2
        %v951 = vmax.f32 %v949, %v950
        %v952 = vrot.slane %v951, 1
        %v953 = vmax.f32 %v951, %v952
        %v954 = vsel %vm512, %v511, -inf
        %v955 = vrot.slane %v954, 4
        %v956 = vmax.f32 %v954, %v955
        %v957 = vrot.slane %v956, 2
        %v958 = vmax.f32 %v956, %v957
        %v959 = vrot.slane %v958, 1
        %v960 = vmax.f32 %v958, %v959
        %v961 = vmax.f32 %v519, %v526
        %v962 = vmax.f32 %v961, %v533
        %v963 = vmax.f32 %v962, %v540
        %v964 = vmax.f32 %v547, %v554
        %v965 = vmax.f32 %v964, %v561
        %v966 = vmax.f32 %v965, %v568
        %v967 = vmax.f32 %v575, %v582
        %v968 = vmax.f32 %v967, %v589
        %v969 = vmax.f32 %v968, %v596
        %v970 = vmax.f32 %v603, %v610
        %v971 = vmax.f32 %v970, %v617
        %v972 = vmax.f32 %v971, %v624
        %v973 = vmax.f32 %v631, %v638
        %v974 = vmax.f32 %v973, %v645
        %v975 = vmax.f32 %v974, %v652
        %v976 = vmax.f32 %v659, %v666
        %v977 = vmax.f32 %v976, %v673
        %v978 = vmax.f32 %v977, %v680
        %v979 = vmax.f32 %v687, %v694
        %v980 = vmax.f32 %v979, %v701
        %v981 = vmax.f32 %v980, %v708
        %v982 = vmax.f32 %v715, %v722
        %v983 = vmax.f32 %v982, %v729
        %v984 = vmax.f32 %v983, %v736
        %v985 = vmax.f32 %v743, %v750
        %v986 = vmax.f32 %v985, %v757
        %v987 = vmax.f32 %v986, %v764
        %v988 = vmax.f32 %v771, %v778
        %v989 = vmax.f32 %v988, %v785
        %v990 = vmax.f32 %v989, %v792
        %v991 = vmax.f32 %v799, %v806
        %v992 = vmax.f32 %v991, %v813
        %v993 = vmax.f32 %v992, %v820
        %v994 = vmax.f32 %v827, %v834
        %v995 = vmax.f32 %v994, %v841
        %v996 = vmax.f32 %v995, %v848
        %v997 = vmax.f32 %v855, %v862
        %v998 = vmax.f32 %v997, %v869
        %v999 = vmax.f32 %v998, %v876
        %v1000 = vmax.f32 %v883, %v890
        %v1001 = vmax.f32 %v1000, %v897
        %v1002 = vmax.f32 %v1001, %v904
        %v1003 = vmax.f32 %v911, %v918
        %v1004 = vmax.f32 %v1003, %v925
        %v1005 = vmax.f32 %v1004, %v932
        %v1006 = vmax.f32 %v939, %v946
        %v1007 = vmax.f32 %v1006, %v953
        %v1008 = vmax.f32 %v1007, %v960
        %v1009 = vmax.f32 %v963, %v966
        %v1010 = vmax.f32 %v1009, %v969
        %v1011 = vmax.f32 %v1010, %v972
        %v1012 = vmax.f32 %v975, %v978
        %v1013 = vmax.f32 %v1012, %v981
        %v1014 = vmax.f32 %v1013, %v984
        %v1015 = vmax.f32 %v987, %v990
        %v1016 = vmax.f32 %v1015, %v993
        %v1017 = vmax.f32 %v1016, %v996
        %v1018 = vmax.f32 %v999, %v1002
        %v1019 = vmax.f32 %v1018, %v1005
        %v1020 = vmax.f32 %v1019, %v1008
        %vm1021 = vcmask 0
        %1022 = vst.msk [vmem:[%s242] sm:$0x1] %vm1021, %v1011
        %1023 = vst.msk [vmem:[%s242 + $0x1] sm:$0x1] %vm1021, %v1014
        %1024 = vst.msk [vmem:[%s242 + $0x2] sm:$0x1] %vm1021, %v1017
        %1025 = vst.msk [vmem:[%s242 + $0x3] sm:$0x1] %vm1021, %v1020
        %v1091 = vunpack.c.l.s4 1983009808
        %v1092 = vunpack.c.0.s8 %v1091
        %v1093 = vlaneseq
        %v1094 = vshrl.u32 %v1093, 7
        %v1095 = vsub.s32 %v1092, %v1094
        %v1096 = vrot.slane %v255, %v1095
        %v1097 = vcombine.high %v1096, %v1096
        %v1099 = vunpack.c.l.s4 1983009808
        %v1100 = vunpack.c.0.s8 %v1099
        %v1101 = vlaneseq
        %v1102 = vshrl.u32 %v1101, 7
        %v1103 = vsub.s32 %v1100, %v1102
        %v1104 = vrot.slane %v256, %v1103
        %v1105 = vcombine.high %v1104, %v1104
        %v1107 = vunpack.c.l.s4 1983009808
        %v1108 = vunpack.c.0.s8 %v1107
        %v1109 = vlaneseq
        %v1110 = vshrl.u32 %v1109, 7
        %v1111 = vsub.s32 %v1108, %v1110
        %v1112 = vrot.slane %v257, %v1111
        %v1113 = vcombine.high %v1112, %v1112
        %v1115 = vunpack.c.l.s4 1983009808
        %v1116 = vunpack.c.0.s8 %v1115
        %v1117 = vlaneseq
        %v1118 = vshrl.u32 %v1117, 7
        %v1119 = vsub.s32 %v1116, %v1118
        %v1120 = vrot.slane %v258, %v1119
        %v1121 = vcombine.high %v1120, %v1120
        %v1123 = vunpack.c.l.s4 1983009808
        %v1124 = vunpack.c.0.s8 %v1123
        %v1125 = vlaneseq
        %v1126 = vshrl.u32 %v1125, 7
        %v1127 = vsub.s32 %v1124, %v1126
        %v1128 = vrot.slane %v259, %v1127
        %v1129 = vcombine.high %v1128, %v1128
        %v1131 = vunpack.c.l.s4 1983009808
        %v1132 = vunpack.c.0.s8 %v1131
        %v1133 = vlaneseq
        %v1134 = vshrl.u32 %v1133, 7
        %v1135 = vsub.s32 %v1132, %v1134
        %v1136 = vrot.slane %v260, %v1135
        %v1137 = vcombine.high %v1136, %v1136
        %v1139 = vunpack.c.l.s4 1983009808
        %v1140 = vunpack.c.0.s8 %v1139
        %v1141 = vlaneseq
        %v1142 = vshrl.u32 %v1141, 7
        %v1143 = vsub.s32 %v1140, %v1142
        %v1144 = vrot.slane %v261, %v1143
        %v1145 = vcombine.high %v1144, %v1144
        %v1147 = vunpack.c.l.s4 1983009808
        %v1148 = vunpack.c.0.s8 %v1147
        %v1149 = vlaneseq
        %v1150 = vshrl.u32 %v1149, 7
        %v1151 = vsub.s32 %v1148, %v1150
        %v1152 = vrot.slane %v262, %v1151
        %v1153 = vcombine.high %v1152, %v1152
        %v1155 = vunpack.c.l.s4 1983009808
        %v1156 = vunpack.c.0.s8 %v1155
        %v1157 = vlaneseq
        %v1158 = vshrl.u32 %v1157, 7
        %v1159 = vsub.s32 %v1156, %v1158
        %v1160 = vrot.slane %v263, %v1159
        %v1161 = vcombine.high %v1160, %v1160
        %v1163 = vunpack.c.l.s4 1983009808
        %v1164 = vunpack.c.0.s8 %v1163
        %v1165 = vlaneseq
        %v1166 = vshrl.u32 %v1165, 7
        %v1167 = vsub.s32 %v1164, %v1166
        %v1168 = vrot.slane %v264, %v1167
        %v1169 = vcombine.high %v1168, %v1168
        %v1171 = vunpack.c.l.s4 1983009808
        %v1172 = vunpack.c.0.s8 %v1171
        %v1173 = vlaneseq
        %v1174 = vshrl.u32 %v1173, 7
        %v1175 = vsub.s32 %v1172, %v1174
        %v1176 = vrot.slane %v265, %v1175
        %v1177 = vcombine.high %v1176, %v1176
        %v1179 = vunpack.c.l.s4 1983009808
        %v1180 = vunpack.c.0.s8 %v1179
        %v1181 = vlaneseq
        %v1182 = vshrl.u32 %v1181, 7
        %v1183 = vsub.s32 %v1180, %v1182
        %v1184 = vrot.slane %v266, %v1183
        %v1185 = vcombine.high %v1184, %v1184
        %v1187 = vunpack.c.l.s4 1983009808
        %v1188 = vunpack.c.0.s8 %v1187
        %v1189 = vlaneseq
        %v1190 = vshrl.u32 %v1189, 7
        %v1191 = vsub.s32 %v1188, %v1190
        %v1192 = vrot.slane %v267, %v1191
        %v1193 = vcombine.high %v1192, %v1192
        %v1195 = vunpack.c.l.s4 1983009808
        %v1196 = vunpack.c.0.s8 %v1195
        %v1197 = vlaneseq
        %v1198 = vshrl.u32 %v1197, 7
        %v1199 = vsub.s32 %v1196, %v1198
        %v1200 = vrot.slane %v268, %v1199
        %v1201 = vcombine.high %v1200, %v1200
        %v1203 = vunpack.c.l.s4 1983009808
        %v1204 = vunpack.c.0.s8 %v1203
        %v1205 = vlaneseq
        %v1206 = vshrl.u32 %v1205, 7
        %v1207 = vsub.s32 %v1204, %v1206
        %v1208 = vrot.slane %v269, %v1207
        %v1209 = vcombine.high %v1208, %v1208
        %v1211 = vunpack.c.l.s4 1983009808
        %v1212 = vunpack.c.0.s8 %v1211
        %v1213 = vlaneseq
        %v1214 = vshrl.u32 %v1213, 7
        %v1215 = vsub.s32 %v1212, %v1214
        %v1216 = vrot.slane %v270, %v1215
        %v1217 = vcombine.high %v1216, %v1216
        %v1219 = vunpack.c.l.s4 1983009808
        %v1220 = vunpack.c.0.s8 %v1219
        %v1221 = vlaneseq
        %v1222 = vshrl.u32 %v1221, 7
        %v1223 = vsub.s32 %v1220, %v1222
        %v1224 = vrot.slane %v271, %v1223
        %v1225 = vcombine.high %v1224, %v1224
        %v1227 = vunpack.c.l.s4 1983009808
        %v1228 = vunpack.c.0.s8 %v1227
        %v1229 = vlaneseq
        %v1230 = vshrl.u32 %v1229, 7
        %v1231 = vsub.s32 %v1228, %v1230
        %v1232 = vrot.slane %v272, %v1231
        %v1233 = vcombine.high %v1232, %v1232
        %v1235 = vunpack.c.l.s4 1983009808
        %v1236 = vunpack.c.0.s8 %v1235
        %v1237 = vlaneseq
        %v1238 = vshrl.u32 %v1237, 7
        %v1239 = vsub.s32 %v1236, %v1238
        %v1240 = vrot.slane %v273, %v1239
        %v1241 = vcombine.high %v1240, %v1240
        %v1243 = vunpack.c.l.s4 1983009808
        %v1244 = vunpack.c.0.s8 %v1243
        %v1245 = vlaneseq
        %v1246 = vshrl.u32 %v1245, 7
        %v1247 = vsub.s32 %v1244, %v1246
        %v1248 = vrot.slane %v274, %v1247
        %v1249 = vcombine.high %v1248, %v1248
        %v1251 = vunpack.c.l.s4 1983009808
        %v1252 = vunpack.c.0.s8 %v1251
        %v1253 = vlaneseq
        %v1254 = vshrl.u32 %v1253, 7
        %v1255 = vsub.s32 %v1252, %v1254
        %v1256 = vrot.slane %v275, %v1255
        %v1257 = vcombine.high %v1256, %v1256
        %v1259 = vunpack.c.l.s4 1983009808
        %v1260 = vunpack.c.0.s8 %v1259
        %v1261 = vlaneseq
        %v1262 = vshrl.u32 %v1261, 7
        %v1263 = vsub.s32 %v1260, %v1262
        %v1264 = vrot.slane %v276, %v1263
        %v1265 = vcombine.high %v1264, %v1264
        %v1267 = vunpack.c.l.s4 1983009808
        %v1268 = vunpack.c.0.s8 %v1267
        %v1269 = vlaneseq
        %v1270 = vshrl.u32 %v1269, 7
        %v1271 = vsub.s32 %v1268, %v1270
        %v1272 = vrot.slane %v277, %v1271
        %v1273 = vcombine.high %v1272, %v1272
        %v1275 = vunpack.c.l.s4 1983009808
        %v1276 = vunpack.c.0.s8 %v1275
        %v1277 = vlaneseq
        %v1278 = vshrl.u32 %v1277, 7
        %v1279 = vsub.s32 %v1276, %v1278
        %v1280 = vrot.slane %v278, %v1279
        %v1281 = vcombine.high %v1280, %v1280
        %v1283 = vunpack.c.l.s4 1983009808
        %v1284 = vunpack.c.0.s8 %v1283
        %v1285 = vlaneseq
        %v1286 = vshrl.u32 %v1285, 7
        %v1287 = vsub.s32 %v1284, %v1286
        %v1288 = vrot.slane %v279, %v1287
        %v1289 = vcombine.high %v1288, %v1288
        %v1291 = vunpack.c.l.s4 1983009808
        %v1292 = vunpack.c.0.s8 %v1291
        %v1293 = vlaneseq
        %v1294 = vshrl.u32 %v1293, 7
        %v1295 = vsub.s32 %v1292, %v1294
        %v1296 = vrot.slane %v280, %v1295
        %v1297 = vcombine.high %v1296, %v1296
        %v1299 = vunpack.c.l.s4 1983009808
        %v1300 = vunpack.c.0.s8 %v1299
        %v1301 = vlaneseq
        %v1302 = vshrl.u32 %v1301, 7
        %v1303 = vsub.s32 %v1300, %v1302
        %v1304 = vrot.slane %v281, %v1303
        %v1305 = vcombine.high %v1304, %v1304
        %v1307 = vunpack.c.l.s4 1983009808
        %v1308 = vunpack.c.0.s8 %v1307
        %v1309 = vlaneseq
        %v1310 = vshrl.u32 %v1309, 7
        %v1311 = vsub.s32 %v1308, %v1310
        %v1312 = vrot.slane %v282, %v1311
        %v1313 = vcombine.high %v1312, %v1312
        %v1315 = vunpack.c.l.s4 1983009808
        %v1316 = vunpack.c.0.s8 %v1315
        %v1317 = vlaneseq
        %v1318 = vshrl.u32 %v1317, 7
        %v1319 = vsub.s32 %v1316, %v1318
        %v1320 = vrot.slane %v283, %v1319
        %v1321 = vcombine.high %v1320, %v1320
        %v1323 = vunpack.c.l.s4 1983009808
        %v1324 = vunpack.c.0.s8 %v1323
        %v1325 = vlaneseq
        %v1326 = vshrl.u32 %v1325, 7
        %v1327 = vsub.s32 %v1324, %v1326
        %v1328 = vrot.slane %v284, %v1327
        %v1329 = vcombine.high %v1328, %v1328
        %v1331 = vunpack.c.l.s4 1983009808
        %v1332 = vunpack.c.0.s8 %v1331
        %v1333 = vlaneseq
        %v1334 = vshrl.u32 %v1333, 7
        %v1335 = vsub.s32 %v1332, %v1334
        %v1336 = vrot.slane %v285, %v1335
        %v1337 = vcombine.high %v1336, %v1336
        %v1339 = vunpack.c.l.s4 1983009808
        %v1340 = vunpack.c.0.s8 %v1339
        %v1341 = vlaneseq
        %v1342 = vshrl.u32 %v1341, 7
        %v1343 = vsub.s32 %v1340, %v1342
        %v1344 = vrot.slane %v286, %v1343
        %v1345 = vcombine.high %v1344, %v1344
        %v1347 = vunpack.c.l.s4 1983009808
        %v1348 = vunpack.c.0.s8 %v1347
        %v1349 = vlaneseq
        %v1350 = vshrl.u32 %v1349, 7
        %v1351 = vsub.s32 %v1348, %v1350
        %v1352 = vrot.slane %v287, %v1351
        %v1353 = vcombine.high %v1352, %v1352
        %v1355 = vunpack.c.l.s4 1983009808
        %v1356 = vunpack.c.0.s8 %v1355
        %v1357 = vlaneseq
        %v1358 = vshrl.u32 %v1357, 7
        %v1359 = vsub.s32 %v1356, %v1358
        %v1360 = vrot.slane %v288, %v1359
        %v1361 = vcombine.high %v1360, %v1360
        %v1363 = vunpack.c.l.s4 1983009808
        %v1364 = vunpack.c.0.s8 %v1363
        %v1365 = vlaneseq
        %v1366 = vshrl.u32 %v1365, 7
        %v1367 = vsub.s32 %v1364, %v1366
        %v1368 = vrot.slane %v289, %v1367
        %v1369 = vcombine.high %v1368, %v1368
        %v1371 = vunpack.c.l.s4 1983009808
        %v1372 = vunpack.c.0.s8 %v1371
        %v1373 = vlaneseq
        %v1374 = vshrl.u32 %v1373, 7
        %v1375 = vsub.s32 %v1372, %v1374
        %v1376 = vrot.slane %v290, %v1375
        %v1377 = vcombine.high %v1376, %v1376
        %v1379 = vunpack.c.l.s4 1983009808
        %v1380 = vunpack.c.0.s8 %v1379
        %v1381 = vlaneseq
        %v1382 = vshrl.u32 %v1381, 7
        %v1383 = vsub.s32 %v1380, %v1382
        %v1384 = vrot.slane %v291, %v1383
        %v1385 = vcombine.high %v1384, %v1384
        %v1387 = vunpack.c.l.s4 1983009808
        %v1388 = vunpack.c.0.s8 %v1387
        %v1389 = vlaneseq
        %v1390 = vshrl.u32 %v1389, 7
        %v1391 = vsub.s32 %v1388, %v1390
        %v1392 = vrot.slane %v292, %v1391
        %v1393 = vcombine.high %v1392, %v1392
        %v1395 = vunpack.c.l.s4 1983009808
        %v1396 = vunpack.c.0.s8 %v1395
        %v1397 = vlaneseq
        %v1398 = vshrl.u32 %v1397, 7
        %v1399 = vsub.s32 %v1396, %v1398
        %v1400 = vrot.slane %v293, %v1399
        %v1401 = vcombine.high %v1400, %v1400
        %v1403 = vunpack.c.l.s4 1983009808
        %v1404 = vunpack.c.0.s8 %v1403
        %v1405 = vlaneseq
        %v1406 = vshrl.u32 %v1405, 7
        %v1407 = vsub.s32 %v1404, %v1406
        %v1408 = vrot.slane %v294, %v1407
        %v1409 = vcombine.high %v1408, %v1408
        %v1411 = vunpack.c.l.s4 1983009808
        %v1412 = vunpack.c.0.s8 %v1411
        %v1413 = vlaneseq
        %v1414 = vshrl.u32 %v1413, 7
        %v1415 = vsub.s32 %v1412, %v1414
        %v1416 = vrot.slane %v295, %v1415
        %v1417 = vcombine.high %v1416, %v1416
        %v1419 = vunpack.c.l.s4 1983009808
        %v1420 = vunpack.c.0.s8 %v1419
        %v1421 = vlaneseq
        %v1422 = vshrl.u32 %v1421, 7
        %v1423 = vsub.s32 %v1420, %v1422
        %v1424 = vrot.slane %v296, %v1423
        %v1425 = vcombine.high %v1424, %v1424
        %v1427 = vunpack.c.l.s4 1983009808
        %v1428 = vunpack.c.0.s8 %v1427
        %v1429 = vlaneseq
        %v1430 = vshrl.u32 %v1429, 7
        %v1431 = vsub.s32 %v1428, %v1430
        %v1432 = vrot.slane %v297, %v1431
        %v1433 = vcombine.high %v1432, %v1432
        %v1435 = vunpack.c.l.s4 1983009808
        %v1436 = vunpack.c.0.s8 %v1435
        %v1437 = vlaneseq
        %v1438 = vshrl.u32 %v1437, 7
        %v1439 = vsub.s32 %v1436, %v1438
        %v1440 = vrot.slane %v298, %v1439
        %v1441 = vcombine.high %v1440, %v1440
        %v1443 = vunpack.c.l.s4 1983009808
        %v1444 = vunpack.c.0.s8 %v1443
        %v1445 = vlaneseq
        %v1446 = vshrl.u32 %v1445, 7
        %v1447 = vsub.s32 %v1444, %v1446
        %v1448 = vrot.slane %v299, %v1447
        %v1449 = vcombine.high %v1448, %v1448
        %v1451 = vunpack.c.l.s4 1983009808
        %v1452 = vunpack.c.0.s8 %v1451
        %v1453 = vlaneseq
        %v1454 = vshrl.u32 %v1453, 7
        %v1455 = vsub.s32 %v1452, %v1454
        %v1456 = vrot.slane %v300, %v1455
        %v1457 = vcombine.high %v1456, %v1456
        %v1459 = vunpack.c.l.s4 1983009808
        %v1460 = vunpack.c.0.s8 %v1459
        %v1461 = vlaneseq
        %v1462 = vshrl.u32 %v1461, 7
        %v1463 = vsub.s32 %v1460, %v1462
        %v1464 = vrot.slane %v301, %v1463
        %v1465 = vcombine.high %v1464, %v1464
        %v1467 = vunpack.c.l.s4 1983009808
        %v1468 = vunpack.c.0.s8 %v1467
        %v1469 = vlaneseq
        %v1470 = vshrl.u32 %v1469, 7
        %v1471 = vsub.s32 %v1468, %v1470
        %v1472 = vrot.slane %v302, %v1471
        %v1473 = vcombine.high %v1472, %v1472
        %v1475 = vunpack.c.l.s4 1983009808
        %v1476 = vunpack.c.0.s8 %v1475
        %v1477 = vlaneseq
        %v1478 = vshrl.u32 %v1477, 7
        %v1479 = vsub.s32 %v1476, %v1478
        %v1480 = vrot.slane %v303, %v1479
        %v1481 = vcombine.high %v1480, %v1480
        %v1483 = vunpack.c.l.s4 1983009808
        %v1484 = vunpack.c.0.s8 %v1483
        %v1485 = vlaneseq
        %v1486 = vshrl.u32 %v1485, 7
        %v1487 = vsub.s32 %v1484, %v1486
        %v1488 = vrot.slane %v304, %v1487
        %v1489 = vcombine.high %v1488, %v1488
        %v1491 = vunpack.c.l.s4 1983009808
        %v1492 = vunpack.c.0.s8 %v1491
        %v1493 = vlaneseq
        %v1494 = vshrl.u32 %v1493, 7
        %v1495 = vsub.s32 %v1492, %v1494
        %v1496 = vrot.slane %v305, %v1495
        %v1497 = vcombine.high %v1496, %v1496
        %v1499 = vunpack.c.l.s4 1983009808
        %v1500 = vunpack.c.0.s8 %v1499
        %v1501 = vlaneseq
        %v1502 = vshrl.u32 %v1501, 7
        %v1503 = vsub.s32 %v1500, %v1502
        %v1504 = vrot.slane %v306, %v1503
        %v1505 = vcombine.high %v1504, %v1504
        %v1507 = vunpack.c.l.s4 1983009808
        %v1508 = vunpack.c.0.s8 %v1507
        %v1509 = vlaneseq
        %v1510 = vshrl.u32 %v1509, 7
        %v1511 = vsub.s32 %v1508, %v1510
        %v1512 = vrot.slane %v307, %v1511
        %v1513 = vcombine.high %v1512, %v1512
        %v1515 = vunpack.c.l.s4 1983009808
        %v1516 = vunpack.c.0.s8 %v1515
        %v1517 = vlaneseq
        %v1518 = vshrl.u32 %v1517, 7
        %v1519 = vsub.s32 %v1516, %v1518
        %v1520 = vrot.slane %v308, %v1519
        %v1521 = vcombine.high %v1520, %v1520
        %v1523 = vunpack.c.l.s4 1983009808
        %v1524 = vunpack.c.0.s8 %v1523
        %v1525 = vlaneseq
        %v1526 = vshrl.u32 %v1525, 7
        %v1527 = vsub.s32 %v1524, %v1526
        %v1528 = vrot.slane %v309, %v1527
        %v1529 = vcombine.high %v1528, %v1528
        %v1531 = vunpack.c.l.s4 1983009808
        %v1532 = vunpack.c.0.s8 %v1531
        %v1533 = vlaneseq
        %v1534 = vshrl.u32 %v1533, 7
        %v1535 = vsub.s32 %v1532, %v1534
        %v1536 = vrot.slane %v310, %v1535
        %v1537 = vcombine.high %v1536, %v1536
        %v1539 = vunpack.c.l.s4 1983009808
        %v1540 = vunpack.c.0.s8 %v1539
        %v1541 = vlaneseq
        %v1542 = vshrl.u32 %v1541, 7
        %v1543 = vsub.s32 %v1540, %v1542
        %v1544 = vrot.slane %v311, %v1543
        %v1545 = vcombine.high %v1544, %v1544
        %v1547 = vunpack.c.l.s4 1983009808
        %v1548 = vunpack.c.0.s8 %v1547
        %v1549 = vlaneseq
        %v1550 = vshrl.u32 %v1549, 7
        %v1551 = vsub.s32 %v1548, %v1550
        %v1552 = vrot.slane %v312, %v1551
        %v1553 = vcombine.high %v1552, %v1552
        %v1555 = vunpack.c.l.s4 1983009808
        %v1556 = vunpack.c.0.s8 %v1555
        %v1557 = vlaneseq
        %v1558 = vshrl.u32 %v1557, 7
        %v1559 = vsub.s32 %v1556, %v1558
        %v1560 = vrot.slane %v313, %v1559
        %v1561 = vcombine.high %v1560, %v1560
        %v1563 = vunpack.c.l.s4 1983009808
        %v1564 = vunpack.c.0.s8 %v1563
        %v1565 = vlaneseq
        %v1566 = vshrl.u32 %v1565, 7
        %v1567 = vsub.s32 %v1564, %v1566
        %v1568 = vrot.slane %v314, %v1567
        %v1569 = vcombine.high %v1568, %v1568
        %v1571 = vunpack.c.l.s4 1983009808
        %v1572 = vunpack.c.0.s8 %v1571
        %v1573 = vlaneseq
        %v1574 = vshrl.u32 %v1573, 7
        %v1575 = vsub.s32 %v1572, %v1574
        %v1576 = vrot.slane %v315, %v1575
        %v1577 = vcombine.high %v1576, %v1576
        %v1579 = vunpack.c.l.s4 1983009808
        %v1580 = vunpack.c.0.s8 %v1579
        %v1581 = vlaneseq
        %v1582 = vshrl.u32 %v1581, 7
        %v1583 = vsub.s32 %v1580, %v1582
        %v1584 = vrot.slane %v316, %v1583
        %v1585 = vcombine.high %v1584, %v1584
        %v1587 = vunpack.c.l.s4 1983009808
        %v1588 = vunpack.c.0.s8 %v1587
        %v1589 = vlaneseq
        %v1590 = vshrl.u32 %v1589, 7
        %v1591 = vsub.s32 %v1588, %v1590
        %v1592 = vrot.slane %v317, %v1591
        %v1593 = vcombine.high %v1592, %v1592
        %v1595 = vunpack.c.l.s4 1983009808
        %v1596 = vunpack.c.0.s8 %v1595
        %v1597 = vlaneseq
        %v1598 = vshrl.u32 %v1597, 7
        %v1599 = vsub.s32 %v1596, %v1598
        %v1600 = vrot.slane %v318, %v1599
        %v1601 = vcombine.high %v1600, %v1600
        %vm1730 = vcmask 25600
        %v1731 = vsel %vm1730, %v1096, -inf
        %1732 = vmax.xlane.f32.xlu0 %v1731
        %v1733 = vpop.xlane.xlu0 %1732
        %v1734 = vsel %vm1730, %v1097, -inf
        %1735 = vmax.xlane.f32.xlu0 %v1734
        %v1736 = vpop.xlane.xlu0 %1735
        %v1737 = vsel %vm1730, %v1104, -inf
        %1738 = vmax.xlane.f32.xlu0 %v1737
        %v1739 = vpop.xlane.xlu0 %1738
        %v1740 = vsel %vm1730, %v1105, -inf
        %1741 = vmax.xlane.f32.xlu0 %v1740
        %v1742 = vpop.xlane.xlu0 %1741
        %v1743 = vsel %vm1730, %v1112, -inf
        %1744 = vmax.xlane.f32.xlu0 %v1743
        %v1745 = vpop.xlane.xlu0 %1744
        %v1746 = vsel %vm1730, %v1113, -inf
        %1747 = vmax.xlane.f32.xlu0 %v1746
        %v1748 = vpop.xlane.xlu0 %1747
        %v1749 = vsel %vm1730, %v1120, -inf
        %1750 = vmax.xlane.f32.xlu0 %v1749
        %v1751 = vpop.xlane.xlu0 %1750
        %v1752 = vsel %vm1730, %v1121, -inf
        %1753 = vmax.xlane.f32.xlu0 %v1752
        %v1754 = vpop.xlane.xlu0 %1753
        %v1755 = vsel %vm1730, %v1128, -inf
        %1756 = vmax.xlane.f32.xlu0 %v1755
        %v1757 = vpop.xlane.xlu0 %1756
        %v1758 = vsel %vm1730, %v1129, -inf
        %1759 = vmax.xlane.f32.xlu0 %v1758
        %v1760 = vpop.xlane.xlu0 %1759
        %v1761 = vsel %vm1730, %v1136, -inf
        %1762 = vmax.xlane.f32.xlu0 %v1761
        %v1763 = vpop.xlane.xlu0 %1762
        %v1764 = vsel %vm1730, %v1137, -inf
        %1765 = vmax.xlane.f32.xlu0 %v1764
        %v1766 = vpop.xlane.xlu0 %1765
        %v1767 = vsel %vm1730, %v1144, -inf
        %1768 = vmax.xlane.f32.xlu0 %v1767
        %v1769 = vpop.xlane.xlu0 %1768
        %v1770 = vsel %vm1730, %v1145, -inf
        %1771 = vmax.xlane.f32.xlu0 %v1770
        %v1772 = vpop.xlane.xlu0 %1771
        %v1773 = vsel %vm1730, %v1152, -inf
        %1774 = vmax.xlane.f32.xlu0 %v1773
        %v1775 = vpop.xlane.xlu0 %1774
        %v1776 = vsel %vm1730, %v1153, -inf
        %1777 = vmax.xlane.f32.xlu0 %v1776
        %v1778 = vpop.xlane.xlu0 %1777
        %v1779 = vsel %vm1730, %v1160, -inf
        %1780 = vmax.xlane.f32.xlu0 %v1779
        %v1781 = vpop.xlane.xlu0 %1780
        %v1782 = vsel %vm1730, %v1161, -inf
        %1783 = vmax.xlane.f32.xlu0 %v1782
        %v1784 = vpop.xlane.xlu0 %1783
        %v1785 = vsel %vm1730, %v1168, -inf
        %1786 = vmax.xlane.f32.xlu0 %v1785
        %v1787 = vpop.xlane.xlu0 %1786
        %v1788 = vsel %vm1730, %v1169, -inf
        %1789 = vmax.xlane.f32.xlu0 %v1788
        %v1790 = vpop.xlane.xlu0 %1789
        %v1791 = vsel %vm1730, %v1176, -inf
        %1792 = vmax.xlane.f32.xlu0 %v1791
        %v1793 = vpop.xlane.xlu0 %1792
        %v1794 = vsel %vm1730, %v1177, -inf
        %1795 = vmax.xlane.f32.xlu0 %v1794
        %v1796 = vpop.xlane.xlu0 %1795
        %v1797 = vsel %vm1730, %v1184, -inf
        %1798 = vmax.xlane.f32.xlu0 %v1797
        %v1799 = vpop.xlane.xlu0 %1798
        %v1800 = vsel %vm1730, %v1185, -inf
        %1801 = vmax.xlane.f32.xlu0 %v1800
        %v1802 = vpop.xlane.xlu0 %1801
        %v1803 = vsel %vm1730, %v1192, -inf
        %1804 = vmax.xlane.f32.xlu0 %v1803
        %v1805 = vpop.xlane.xlu0 %1804
        %v1806 = vsel %vm1730, %v1193, -inf
        %1807 = vmax.xlane.f32.xlu0 %v1806
        %v1808 = vpop.xlane.xlu0 %1807
        %v1809 = vsel %vm1730, %v1200, -inf
        %1810 = vmax.xlane.f32.xlu0 %v1809
        %v1811 = vpop.xlane.xlu0 %1810
        %v1812 = vsel %vm1730, %v1201, -inf
        %1813 = vmax.xlane.f32.xlu0 %v1812
        %v1814 = vpop.xlane.xlu0 %1813
        %v1815 = vsel %vm1730, %v1208, -inf
        %1816 = vmax.xlane.f32.xlu0 %v1815
        %v1817 = vpop.xlane.xlu0 %1816
        %v1818 = vsel %vm1730, %v1209, -inf
        %1819 = vmax.xlane.f32.xlu0 %v1818
        %v1820 = vpop.xlane.xlu0 %1819
        %v1821 = vsel %vm1730, %v1216, -inf
        %1822 = vmax.xlane.f32.xlu0 %v1821
        %v1823 = vpop.xlane.xlu0 %1822
        %v1824 = vsel %vm1730, %v1217, -inf
        %1825 = vmax.xlane.f32.xlu0 %v1824
        %v1826 = vpop.xlane.xlu0 %1825
        %v1827 = vsel %vm1730, %v1224, -inf
        %1828 = vmax.xlane.f32.xlu0 %v1827
        %v1829 = vpop.xlane.xlu0 %1828
        %v1830 = vsel %vm1730, %v1225, -inf
        %1831 = vmax.xlane.f32.xlu0 %v1830
        %v1832 = vpop.xlane.xlu0 %1831
        %v1833 = vsel %vm1730, %v1232, -inf
        %1834 = vmax.xlane.f32.xlu0 %v1833
        %v1835 = vpop.xlane.xlu0 %1834
        %v1836 = vsel %vm1730, %v1233, -inf
        %1837 = vmax.xlane.f32.xlu0 %v1836
        %v1838 = vpop.xlane.xlu0 %1837
        %v1839 = vsel %vm1730, %v1240, -inf
        %1840 = vmax.xlane.f32.xlu0 %v1839
        %v1841 = vpop.xlane.xlu0 %1840
        %v1842 = vsel %vm1730, %v1241, -inf
        %1843 = vmax.xlane.f32.xlu0 %v1842
        %v1844 = vpop.xlane.xlu0 %1843
        %v1845 = vsel %vm1730, %v1248, -inf
        %1846 = vmax.xlane.f32.xlu0 %v1845
        %v1847 = vpop.xlane.xlu0 %1846
        %v1848 = vsel %vm1730, %v1249, -inf
        %1849 = vmax.xlane.f32.xlu0 %v1848
        %v1850 = vpop.xlane.xlu0 %1849
        %v1851 = vsel %vm1730, %v1256, -inf
        %1852 = vmax.xlane.f32.xlu0 %v1851
        %v1853 = vpop.xlane.xlu0 %1852
        %v1854 = vsel %vm1730, %v1257, -inf
        %1855 = vmax.xlane.f32.xlu0 %v1854
        %v1856 = vpop.xlane.xlu0 %1855
        %v1857 = vsel %vm1730, %v1264, -inf
        %1858 = vmax.xlane.f32.xlu0 %v1857
        %v1859 = vpop.xlane.xlu0 %1858
        %v1860 = vsel %vm1730, %v1265, -inf
        %1861 = vmax.xlane.f32.xlu0 %v1860
        %v1862 = vpop.xlane.xlu0 %1861
        %v1863 = vsel %vm1730, %v1272, -inf
        %1864 = vmax.xlane.f32.xlu0 %v1863
        %v1865 = vpop.xlane.xlu0 %1864
        %v1866 = vsel %vm1730, %v1273, -inf
        %1867 = vmax.xlane.f32.xlu0 %v1866
        %v1868 = vpop.xlane.xlu0 %1867
        %v1869 = vsel %vm1730, %v1280, -inf
        %1870 = vmax.xlane.f32.xlu0 %v1869
        %v1871 = vpop.xlane.xlu0 %1870
        %v1872 = vsel %vm1730, %v1281, -inf
        %1873 = vmax.xlane.f32.xlu0 %v1872
        %v1874 = vpop.xlane.xlu0 %1873
        %v1875 = vsel %vm1730, %v1288, -inf
        %1876 = vmax.xlane.f32.xlu0 %v1875
        %v1877 = vpop.xlane.xlu0 %1876
        %v1878 = vsel %vm1730, %v1289, -inf
        %1879 = vmax.xlane.f32.xlu0 %v1878
        %v1880 = vpop.xlane.xlu0 %1879
        %v1881 = vsel %vm1730, %v1296, -inf
        %1882 = vmax.xlane.f32.xlu0 %v1881
        %v1883 = vpop.xlane.xlu0 %1882
        %v1884 = vsel %vm1730, %v1297, -inf
        %1885 = vmax.xlane.f32.xlu0 %v1884
        %v1886 = vpop.xlane.xlu0 %1885
        %v1887 = vsel %vm1730, %v1304, -inf
        %1888 = vmax.xlane.f32.xlu0 %v1887
        %v1889 = vpop.xlane.xlu0 %1888
        %v1890 = vsel %vm1730, %v1305, -inf
        %1891 = vmax.xlane.f32.xlu0 %v1890
        %v1892 = vpop.xlane.xlu0 %1891
        %v1893 = vsel %vm1730, %v1312, -inf
        %1894 = vmax.xlane.f32.xlu0 %v1893
        %v1895 = vpop.xlane.xlu0 %1894
        %v1896 = vsel %vm1730, %v1313, -inf
        %1897 = vmax.xlane.f32.xlu0 %v1896
        %v1898 = vpop.xlane.xlu0 %1897
        %v1899 = vsel %vm1730, %v1320, -inf
        %1900 = vmax.xlane.f32.xlu0 %v1899
        %v1901 = vpop.xlane.xlu0 %1900
        %v1902 = vsel %vm1730, %v1321, -inf
        %1903 = vmax.xlane.f32.xlu0 %v1902
        %v1904 = vpop.xlane.xlu0 %1903
        %v1905 = vsel %vm1730, %v1328, -inf
        %1906 = vmax.xlane.f32.xlu0 %v1905
        %v1907 = vpop.xlane.xlu0 %1906
        %v1908 = vsel %vm1730, %v1329, -inf
        %1909 = vmax.xlane.f32.xlu0 %v1908
        %v1910 = vpop.xlane.xlu0 %1909
        %v1911 = vsel %vm1730, %v1336, -inf
        %1912 = vmax.xlane.f32.xlu0 %v1911
        %v1913 = vpop.xlane.xlu0 %1912
        %v1914 = vsel %vm1730, %v1337, -inf
        %1915 = vmax.xlane.f32.xlu0 %v1914
        %v1916 = vpop.xlane.xlu0 %1915
        %v1917 = vsel %vm1730, %v1344, -inf
        %1918 = vmax.xlane.f32.xlu0 %v1917
        %v1919 = vpop.xlane.xlu0 %1918
        %v1920 = vsel %vm1730, %v1345, -inf
        %1921 = vmax.xlane.f32.xlu0 %v1920
        %v1922 = vpop.xlane.xlu0 %1921
        %v1923 = vsel %vm1730, %v1352, -inf
        %1924 = vmax.xlane.f32.xlu0 %v1923
        %v1925 = vpop.xlane.xlu0 %1924
        %v1926 = vsel %vm1730, %v1353, -inf
        %1927 = vmax.xlane.f32.xlu0 %v1926
        %v1928 = vpop.xlane.xlu0 %1927
        %v1929 = vsel %vm1730, %v1360, -inf
        %1930 = vmax.xlane.f32.xlu0 %v1929
        %v1931 = vpop.xlane.xlu0 %1930
        %v1932 = vsel %vm1730, %v1361, -inf
        %1933 = vmax.xlane.f32.xlu0 %v1932
        %v1934 = vpop.xlane.xlu0 %1933
        %v1935 = vsel %vm1730, %v1368, -inf
        %1936 = vmax.xlane.f32.xlu0 %v1935
        %v1937 = vpop.xlane.xlu0 %1936
        %v1938 = vsel %vm1730, %v1369, -inf
        %1939 = vmax.xlane.f32.xlu0 %v1938
        %v1940 = vpop.xlane.xlu0 %1939
        %v1941 = vsel %vm1730, %v1376, -inf
        %1942 = vmax.xlane.f32.xlu0 %v1941
        %v1943 = vpop.xlane.xlu0 %1942
        %v1944 = vsel %vm1730, %v1377, -inf
        %1945 = vmax.xlane.f32.xlu0 %v1944
        %v1946 = vpop.xlane.xlu0 %1945
        %v1947 = vsel %vm1730, %v1384, -inf
        %1948 = vmax.xlane.f32.xlu0 %v1947
        %v1949 = vpop.xlane.xlu0 %1948
        %v1950 = vsel %vm1730, %v1385, -inf
        %1951 = vmax.xlane.f32.xlu0 %v1950
        %v1952 = vpop.xlane.xlu0 %1951
        %v1953 = vsel %vm1730, %v1392, -inf
        %1954 = vmax.xlane.f32.xlu0 %v1953
        %v1955 = vpop.xlane.xlu0 %1954
        %v1956 = vsel %vm1730, %v1393, -inf
        %1957 = vmax.xlane.f32.xlu0 %v1956
        %v1958 = vpop.xlane.xlu0 %1957
        %v1959 = vsel %vm1730, %v1400, -inf
        %1960 = vmax.xlane.f32.xlu0 %v1959
        %v1961 = vpop.xlane.xlu0 %1960
        %v1962 = vsel %vm1730, %v1401, -inf
        %1963 = vmax.xlane.f32.xlu0 %v1962
        %v1964 = vpop.xlane.xlu0 %1963
        %v1965 = vsel %vm1730, %v1408, -inf
        %1966 = vmax.xlane.f32.xlu0 %v1965
        %v1967 = vpop.xlane.xlu0 %1966
        %v1968 = vsel %vm1730, %v1409, -inf
        %1969 = vmax.xlane.f32.xlu0 %v1968
        %v1970 = vpop.xlane.xlu0 %1969
        %v1971 = vsel %vm1730, %v1416, -inf
        %1972 = vmax.xlane.f32.xlu0 %v1971
        %v1973 = vpop.xlane.xlu0 %1972
        %v1974 = vsel %vm1730, %v1417, -inf
        %1975 = vmax.xlane.f32.xlu0 %v1974
        %v1976 = vpop.xlane.xlu0 %1975
        %v1977 = vsel %vm1730, %v1424, -inf
        %1978 = vmax.xlane.f32.xlu0 %v1977
        %v1979 = vpop.xlane.xlu0 %1978
        %v1980 = vsel %vm1730, %v1425, -inf
        %1981 = vmax.xlane.f32.xlu0 %v1980
        %v1982 = vpop.xlane.xlu0 %1981
        %v1983 = vsel %vm1730, %v1432, -inf
        %1984 = vmax.xlane.f32.xlu0 %v1983
        %v1985 = vpop.xlane.xlu0 %1984
        %v1986 = vsel %vm1730, %v1433, -inf
        %1987 = vmax.xlane.f32.xlu0 %v1986
        %v1988 = vpop.xlane.xlu0 %1987
        %v1989 = vsel %vm1730, %v1440, -inf
        %1990 = vmax.xlane.f32.xlu0 %v1989
        %v1991 = vpop.xlane.xlu0 %1990
        %v1992 = vsel %vm1730, %v1441, -inf
        %1993 = vmax.xlane.f32.xlu0 %v1992
        %v1994 = vpop.xlane.xlu0 %1993
        %v1995 = vsel %vm1730, %v1448, -inf
        %1996 = vmax.xlane.f32.xlu0 %v1995
        %v1997 = vpop.xlane.xlu0 %1996
        %v1998 = vsel %vm1730, %v1449, -inf
        %1999 = vmax.xlane.f32.xlu0 %v1998
        %v2000 = vpop.xlane.xlu0 %1999
        %v2001 = vsel %vm1730, %v1456, -inf
        %2002 = vmax.xlane.f32.xlu0 %v2001
        %v2003 = vpop.xlane.xlu0 %2002
        %v2004 = vsel %vm1730, %v1457, -inf
        %2005 = vmax.xlane.f32.xlu0 %v2004
        %v2006 = vpop.xlane.xlu0 %2005
        %v2007 = vsel %vm1730, %v1464, -inf
        %2008 = vmax.xlane.f32.xlu0 %v2007
        %v2009 = vpop.xlane.xlu0 %2008
        %v2010 = vsel %vm1730, %v1465, -inf
        %2011 = vmax.xlane.f32.xlu0 %v2010
        %v2012 = vpop.xlane.xlu0 %2011
        %v2013 = vsel %vm1730, %v1472, -inf
        %2014 = vmax.xlane.f32.xlu0 %v2013
        %v2015 = vpop.xlane.xlu0 %2014
        %v2016 = vsel %vm1730, %v1473, -inf
        %2017 = vmax.xlane.f32.xlu0 %v2016
        %v2018 = vpop.xlane.xlu0 %2017
        %v2019 = vsel %vm1730, %v1480, -inf
        %2020 = vmax.xlane.f32.xlu0 %v2019
        %v2021 = vpop.xlane.xlu0 %2020
        %v2022 = vsel %vm1730, %v1481, -inf
        %2023 = vmax.xlane.f32.xlu0 %v2022
        %v2024 = vpop.xlane.xlu0 %2023
        %v2025 = vsel %vm1730, %v1488, -inf
        %2026 = vmax.xlane.f32.xlu0 %v2025
        %v2027 = vpop.xlane.xlu0 %2026
        %v2028 = vsel %vm1730, %v1489, -inf
        %2029 = vmax.xlane.f32.xlu0 %v2028
        %v2030 = vpop.xlane.xlu0 %2029
        %v2031 = vsel %vm1730, %v1496, -inf
        %2032 = vmax.xlane.f32.xlu0 %v2031
        %v2033 = vpop.xlane.xlu0 %2032
        %v2034 = vsel %vm1730, %v1497, -inf
        %2035 = vmax.xlane.f32.xlu0 %v2034
        %v2036 = vpop.xlane.xlu0 %2035
        %v2037 = vsel %vm1730, %v1504, -inf
        %2038 = vmax.xlane.f32.xlu0 %v2037
        %v2039 = vpop.xlane.xlu0 %2038
        %v2040 = vsel %vm1730, %v1505, -inf
        %2041 = vmax.xlane.f32.xlu0 %v2040
        %v2042 = vpop.xlane.xlu0 %2041
        %v2043 = vsel %vm1730, %v1512, -inf
        %2044 = vmax.xlane.f32.xlu0 %v2043
        %v2045 = vpop.xlane.xlu0 %2044
        %v2046 = vsel %vm1730, %v1513, -inf
        %2047 = vmax.xlane.f32.xlu0 %v2046
        %v2048 = vpop.xlane.xlu0 %2047
        %v2049 = vsel %vm1730, %v1520, -inf
        %2050 = vmax.xlane.f32.xlu0 %v2049
        %v2051 = vpop.xlane.xlu0 %2050
        %v2052 = vsel %vm1730, %v1521, -inf
        %2053 = vmax.xlane.f32.xlu0 %v2052
        %v2054 = vpop.xlane.xlu0 %2053
        %v2055 = vsel %vm1730, %v1528, -inf
        %2056 = vmax.xlane.f32.xlu0 %v2055
        %v2057 = vpop.xlane.xlu0 %2056
        %v2058 = vsel %vm1730, %v1529, -inf
        %2059 = vmax.xlane.f32.xlu0 %v2058
        %v2060 = vpop.xlane.xlu0 %2059
        %v2061 = vsel %vm1730, %v1536, -inf
        %2062 = vmax.xlane.f32.xlu0 %v2061
        %v2063 = vpop.xlane.xlu0 %2062
        %v2064 = vsel %vm1730, %v1537, -inf
        %2065 = vmax.xlane.f32.xlu0 %v2064
        %v2066 = vpop.xlane.xlu0 %2065
        %v2067 = vsel %vm1730, %v1544, -inf
        %2068 = vmax.xlane.f32.xlu0 %v2067
        %v2069 = vpop.xlane.xlu0 %2068
        %v2070 = vsel %vm1730, %v1545, -inf
        %2071 = vmax.xlane.f32.xlu0 %v2070
        %v2072 = vpop.xlane.xlu0 %2071
        %v2073 = vsel %vm1730, %v1552, -inf
        %2074 = vmax.xlane.f32.xlu0 %v2073
        %v2075 = vpop.xlane.xlu0 %2074
        %v2076 = vsel %vm1730, %v1553, -inf
        %2077 = vmax.xlane.f32.xlu0 %v2076
        %v2078 = vpop.xlane.xlu0 %2077
        %v2079 = vsel %vm1730, %v1560, -inf
        %2080 = vmax.xlane.f32.xlu0 %v2079
        %v2081 = vpop.xlane.xlu0 %2080
        %v2082 = vsel %vm1730, %v1561, -inf
        %2083 = vmax.xlane.f32.xlu0 %v2082
        %v2084 = vpop.xlane.xlu0 %2083
        %v2085 = vsel %vm1730, %v1568, -inf
        %2086 = vmax.xlane.f32.xlu0 %v2085
        %v2087 = vpop.xlane.xlu0 %2086
        %v2088 = vsel %vm1730, %v1569, -inf
        %2089 = vmax.xlane.f32.xlu0 %v2088
        %v2090 = vpop.xlane.xlu0 %2089
        %v2091 = vsel %vm1730, %v1576, -inf
        %2092 = vmax.xlane.f32.xlu0 %v2091
        %v2093 = vpop.xlane.xlu0 %2092
        %v2094 = vsel %vm1730, %v1577, -inf
        %2095 = vmax.xlane.f32.xlu0 %v2094
        %v2096 = vpop.xlane.xlu0 %2095
        %v2097 = vsel %vm1730, %v1584, -inf
        %2098 = vmax.xlane.f32.xlu0 %v2097
        %v2099 = vpop.xlane.xlu0 %2098
        %v2100 = vsel %vm1730, %v1585, -inf
        %2101 = vmax.xlane.f32.xlu0 %v2100
        %v2102 = vpop.xlane.xlu0 %2101
        %v2103 = vsel %vm1730, %v1592, -inf
        %2104 = vmax.xlane.f32.xlu0 %v2103
        %v2105 = vpop.xlane.xlu0 %2104
        %v2106 = vsel %vm1730, %v1593, -inf
        %2107 = vmax.xlane.f32.xlu0 %v2106
        %v2108 = vpop.xlane.xlu0 %2107
        %v2109 = vsel %vm1730, %v1600, -inf
        %2110 = vmax.xlane.f32.xlu0 %v2109
        %v2111 = vpop.xlane.xlu0 %2110
        %v2112 = vsel %vm1730, %v1601, -inf
        %2113 = vmax.xlane.f32.xlu0 %v2112
        %v2114 = vpop.xlane.xlu0 %2113
        %v2243 = vlaneseq
        %v2244 = vand.u32 %v2243, 127
        %v2245 = vlaneseq
        %v2246 = vshrl.u32 %v2245, 7
        %v2247 = vsub.s32 %v2244, %v2246
        %v2248 = vrot.slane %v1733, %v2247
        %v2249 = vlaneseq
        %v2250 = vshrl.u32 %v2249, 7
        %v2251 = vsub.s32 %v2244, %v2250
        %v2252 = vrot.slane %v1736, %v2251
        %v2253 = vlaneseq
        %v2254 = vshrl.u32 %v2253, 7
        %v2255 = vsub.s32 %v2244, %v2254
        %v2256 = vrot.slane %v1739, %v2255
        %v2257 = vlaneseq
        %v2258 = vshrl.u32 %v2257, 7
        %v2259 = vsub.s32 %v2244, %v2258
        %v2260 = vrot.slane %v1742, %v2259
        %v2261 = vlaneseq
        %v2262 = vshrl.u32 %v2261, 7
        %v2263 = vsub.s32 %v2244, %v2262
        %v2264 = vrot.slane %v1745, %v2263
        %v2265 = vlaneseq
        %v2266 = vshrl.u32 %v2265, 7
        %v2267 = vsub.s32 %v2244, %v2266
        %v2268 = vrot.slane %v1748, %v2267
        %v2269 = vlaneseq
        %v2270 = vshrl.u32 %v2269, 7
        %v2271 = vsub.s32 %v2244, %v2270
        %v2272 = vrot.slane %v1751, %v2271
        %v2273 = vlaneseq
        %v2274 = vshrl.u32 %v2273, 7
        %v2275 = vsub.s32 %v2244, %v2274
        %v2276 = vrot.slane %v1754, %v2275
        %v2277 = vlaneseq
        %v2278 = vshrl.u32 %v2277, 7
        %v2279 = vsub.s32 %v2244, %v2278
        %v2280 = vrot.slane %v1757, %v2279
        %v2281 = vlaneseq
        %v2282 = vshrl.u32 %v2281, 7
        %v2283 = vsub.s32 %v2244, %v2282
        %v2284 = vrot.slane %v1760, %v2283
        %v2285 = vlaneseq
        %v2286 = vshrl.u32 %v2285, 7
        %v2287 = vsub.s32 %v2244, %v2286
        %v2288 = vrot.slane %v1763, %v2287
        %v2289 = vlaneseq
        %v2290 = vshrl.u32 %v2289, 7
        %v2291 = vsub.s32 %v2244, %v2290
        %v2292 = vrot.slane %v1766, %v2291
        %v2293 = vlaneseq
        %v2294 = vshrl.u32 %v2293, 7
        %v2295 = vsub.s32 %v2244, %v2294
        %v2296 = vrot.slane %v1769, %v2295
        %v2297 = vlaneseq
        %v2298 = vshrl.u32 %v2297, 7
        %v2299 = vsub.s32 %v2244, %v2298
        %v2300 = vrot.slane %v1772, %v2299
        %v2301 = vlaneseq
        %v2302 = vshrl.u32 %v2301, 7
        %v2303 = vsub.s32 %v2244, %v2302
        %v2304 = vrot.slane %v1775, %v2303
        %v2305 = vlaneseq
        %v2306 = vshrl.u32 %v2305, 7
        %v2307 = vsub.s32 %v2244, %v2306
        %v2308 = vrot.slane %v1778, %v2307
        %v2309 = vlaneseq
        %v2310 = vshrl.u32 %v2309, 7
        %v2311 = vsub.s32 %v2244, %v2310
        %v2312 = vrot.slane %v1781, %v2311
        %v2313 = vlaneseq
        %v2314 = vshrl.u32 %v2313, 7
        %v2315 = vsub.s32 %v2244, %v2314
        %v2316 = vrot.slane %v1784, %v2315
        %v2317 = vlaneseq
        %v2318 = vshrl.u32 %v2317, 7
        %v2319 = vsub.s32 %v2244, %v2318
        %v2320 = vrot.slane %v1787, %v2319
        %v2321 = vlaneseq
        %v2322 = vshrl.u32 %v2321, 7
        %v2323 = vsub.s32 %v2244, %v2322
        %v2324 = vrot.slane %v1790, %v2323
        %v2325 = vlaneseq
        %v2326 = vshrl.u32 %v2325, 7
        %v2327 = vsub.s32 %v2244, %v2326
        %v2328 = vrot.slane %v1793, %v2327
        %v2329 = vlaneseq
        %v2330 = vshrl.u32 %v2329, 7
        %v2331 = vsub.s32 %v2244, %v2330
        %v2332 = vrot.slane %v1796, %v2331
        %v2333 = vlaneseq
        %v2334 = vshrl.u32 %v2333, 7
        %v2335 = vsub.s32 %v2244, %v2334
        %v2336 = vrot.slane %v1799, %v2335
        %v2337 = vlaneseq
        %v2338 = vshrl.u32 %v2337, 7
        %v2339 = vsub.s32 %v2244, %v2338
        %v2340 = vrot.slane %v1802, %v2339
        %v2341 = vlaneseq
        %v2342 = vshrl.u32 %v2341, 7
        %v2343 = vsub.s32 %v2244, %v2342
        %v2344 = vrot.slane %v1805, %v2343
        %v2345 = vlaneseq
        %v2346 = vshrl.u32 %v2345, 7
        %v2347 = vsub.s32 %v2244, %v2346
        %v2348 = vrot.slane %v1808, %v2347
        %v2349 = vlaneseq
        %v2350 = vshrl.u32 %v2349, 7
        %v2351 = vsub.s32 %v2244, %v2350
        %v2352 = vrot.slane %v1811, %v2351
        %v2353 = vlaneseq
        %v2354 = vshrl.u32 %v2353, 7
        %v2355 = vsub.s32 %v2244, %v2354
        %v2356 = vrot.slane %v1814, %v2355
        %v2357 = vlaneseq
        %v2358 = vshrl.u32 %v2357, 7
        %v2359 = vsub.s32 %v2244, %v2358
        %v2360 = vrot.slane %v1817, %v2359
        %v2361 = vlaneseq
        %v2362 = vshrl.u32 %v2361, 7
        %v2363 = vsub.s32 %v2244, %v2362
        %v2364 = vrot.slane %v1820, %v2363
        %v2365 = vlaneseq
        %v2366 = vshrl.u32 %v2365, 7
        %v2367 = vsub.s32 %v2244, %v2366
        %v2368 = vrot.slane %v1823, %v2367
        %v2369 = vlaneseq
        %v2370 = vshrl.u32 %v2369, 7
        %v2371 = vsub.s32 %v2244, %v2370
        %v2372 = vrot.slane %v1826, %v2371
        %v2373 = vlaneseq
        %v2374 = vshrl.u32 %v2373, 7
        %v2375 = vsub.s32 %v2244, %v2374
        %v2376 = vrot.slane %v1829, %v2375
        %v2377 = vlaneseq
        %v2378 = vshrl.u32 %v2377, 7
        %v2379 = vsub.s32 %v2244, %v2378
        %v2380 = vrot.slane %v1832, %v2379
        %v2381 = vlaneseq
        %v2382 = vshrl.u32 %v2381, 7
        %v2383 = vsub.s32 %v2244, %v2382
        %v2384 = vrot.slane %v1835, %v2383
        %v2385 = vlaneseq
        %v2386 = vshrl.u32 %v2385, 7
        %v2387 = vsub.s32 %v2244, %v2386
        %v2388 = vrot.slane %v1838, %v2387
        %v2389 = vlaneseq
        %v2390 = vshrl.u32 %v2389, 7
        %v2391 = vsub.s32 %v2244, %v2390
        %v2392 = vrot.slane %v1841, %v2391
        %v2393 = vlaneseq
        %v2394 = vshrl.u32 %v2393, 7
        %v2395 = vsub.s32 %v2244, %v2394
        %v2396 = vrot.slane %v1844, %v2395
        %v2397 = vlaneseq
        %v2398 = vshrl.u32 %v2397, 7
        %v2399 = vsub.s32 %v2244, %v2398
        %v2400 = vrot.slane %v1847, %v2399
        %v2401 = vlaneseq
        %v2402 = vshrl.u32 %v2401, 7
        %v2403 = vsub.s32 %v2244, %v2402
        %v2404 = vrot.slane %v1850, %v2403
        %v2405 = vlaneseq
        %v2406 = vshrl.u32 %v2405, 7
        %v2407 = vsub.s32 %v2244, %v2406
        %v2408 = vrot.slane %v1853, %v2407
        %v2409 = vlaneseq
        %v2410 = vshrl.u32 %v2409, 7
        %v2411 = vsub.s32 %v2244, %v2410
        %v2412 = vrot.slane %v1856, %v2411
        %v2413 = vlaneseq
        %v2414 = vshrl.u32 %v2413, 7
        %v2415 = vsub.s32 %v2244, %v2414
        %v2416 = vrot.slane %v1859, %v2415
        %v2417 = vlaneseq
        %v2418 = vshrl.u32 %v2417, 7
        %v2419 = vsub.s32 %v2244, %v2418
        %v2420 = vrot.slane %v1862, %v2419
        %v2421 = vlaneseq
        %v2422 = vshrl.u32 %v2421, 7
        %v2423 = vsub.s32 %v2244, %v2422
        %v2424 = vrot.slane %v1865, %v2423
        %v2425 = vlaneseq
        %v2426 = vshrl.u32 %v2425, 7
        %v2427 = vsub.s32 %v2244, %v2426
        %v2428 = vrot.slane %v1868, %v2427
        %v2429 = vlaneseq
        %v2430 = vshrl.u32 %v2429, 7
        %v2431 = vsub.s32 %v2244, %v2430
        %v2432 = vrot.slane %v1871, %v2431
        %v2433 = vlaneseq
        %v2434 = vshrl.u32 %v2433, 7
        %v2435 = vsub.s32 %v2244, %v2434
        %v2436 = vrot.slane %v1874, %v2435
        %v2437 = vlaneseq
        %v2438 = vshrl.u32 %v2437, 7
        %v2439 = vsub.s32 %v2244, %v2438
        %v2440 = vrot.slane %v1877, %v2439
        %v2441 = vlaneseq
        %v2442 = vshrl.u32 %v2441, 7
        %v2443 = vsub.s32 %v2244, %v2442
        %v2444 = vrot.slane %v1880, %v2443
        %v2445 = vlaneseq
        %v2446 = vshrl.u32 %v2445, 7
        %v2447 = vsub.s32 %v2244, %v2446
        %v2448 = vrot.slane %v1883, %v2447
        %v2449 = vlaneseq
        %v2450 = vshrl.u32 %v2449, 7
        %v2451 = vsub.s32 %v2244, %v2450
        %v2452 = vrot.slane %v1886, %v2451
        %v2453 = vlaneseq
        %v2454 = vshrl.u32 %v2453, 7
        %v2455 = vsub.s32 %v2244, %v2454
        %v2456 = vrot.slane %v1889, %v2455
        %v2457 = vlaneseq
        %v2458 = vshrl.u32 %v2457, 7
        %v2459 = vsub.s32 %v2244, %v2458
        %v2460 = vrot.slane %v1892, %v2459
        %v2461 = vlaneseq
        %v2462 = vshrl.u32 %v2461, 7
        %v2463 = vsub.s32 %v2244, %v2462
        %v2464 = vrot.slane %v1895, %v2463
        %v2465 = vlaneseq
        %v2466 = vshrl.u32 %v2465, 7
        %v2467 = vsub.s32 %v2244, %v2466
        %v2468 = vrot.slane %v1898, %v2467
        %v2469 = vlaneseq
        %v2470 = vshrl.u32 %v2469, 7
        %v2471 = vsub.s32 %v2244, %v2470
        %v2472 = vrot.slane %v1901, %v2471
        %v2473 = vlaneseq
        %v2474 = vshrl.u32 %v2473, 7
        %v2475 = vsub.s32 %v2244, %v2474
        %v2476 = vrot.slane %v1904, %v2475
        %v2477 = vlaneseq
        %v2478 = vshrl.u32 %v2477, 7
        %v2479 = vsub.s32 %v2244, %v2478
        %v2480 = vrot.slane %v1907, %v2479
        %v2481 = vlaneseq
        %v2482 = vshrl.u32 %v2481, 7
        %v2483 = vsub.s32 %v2244, %v2482
        %v2484 = vrot.slane %v1910, %v2483
        %v2485 = vlaneseq
        %v2486 = vshrl.u32 %v2485, 7
        %v2487 = vsub.s32 %v2244, %v2486
        %v2488 = vrot.slane %v1913, %v2487
        %v2489 = vlaneseq
        %v2490 = vshrl.u32 %v2489, 7
        %v2491 = vsub.s32 %v2244, %v2490
        %v2492 = vrot.slane %v1916, %v2491
        %v2493 = vlaneseq
        %v2494 = vshrl.u32 %v2493, 7
        %v2495 = vsub.s32 %v2244, %v2494
        %v2496 = vrot.slane %v1919, %v2495
        %v2497 = vlaneseq
        %v2498 = vshrl.u32 %v2497, 7
        %v2499 = vsub.s32 %v2244, %v2498
        %v2500 = vrot.slane %v1922, %v2499
        %v2501 = vlaneseq
        %v2502 = vshrl.u32 %v2501, 7
        %v2503 = vsub.s32 %v2244, %v2502
        %v2504 = vrot.slane %v1925, %v2503
        %v2505 = vlaneseq
        %v2506 = vshrl.u32 %v2505, 7
        %v2507 = vsub.s32 %v2244, %v2506
        %v2508 = vrot.slane %v1928, %v2507
        %v2509 = vlaneseq
        %v2510 = vshrl.u32 %v2509, 7
        %v2511 = vsub.s32 %v2244, %v2510
        %v2512 = vrot.slane %v1931, %v2511
        %v2513 = vlaneseq
        %v2514 = vshrl.u32 %v2513, 7
        %v2515 = vsub.s32 %v2244, %v2514
        %v2516 = vrot.slane %v1934, %v2515
        %v2517 = vlaneseq
        %v2518 = vshrl.u32 %v2517, 7
        %v2519 = vsub.s32 %v2244, %v2518
        %v2520 = vrot.slane %v1937, %v2519
        %v2521 = vlaneseq
        %v2522 = vshrl.u32 %v2521, 7
        %v2523 = vsub.s32 %v2244, %v2522
        %v2524 = vrot.slane %v1940, %v2523
        %v2525 = vlaneseq
        %v2526 = vshrl.u32 %v2525, 7
        %v2527 = vsub.s32 %v2244, %v2526
        %v2528 = vrot.slane %v1943, %v2527
        %v2529 = vlaneseq
        %v2530 = vshrl.u32 %v2529, 7
        %v2531 = vsub.s32 %v2244, %v2530
        %v2532 = vrot.slane %v1946, %v2531
        %v2533 = vlaneseq
        %v2534 = vshrl.u32 %v2533, 7
        %v2535 = vsub.s32 %v2244, %v2534
        %v2536 = vrot.slane %v1949, %v2535
        %v2537 = vlaneseq
        %v2538 = vshrl.u32 %v2537, 7
        %v2539 = vsub.s32 %v2244, %v2538
        %v2540 = vrot.slane %v1952, %v2539
        %v2541 = vlaneseq
        %v2542 = vshrl.u32 %v2541, 7
        %v2543 = vsub.s32 %v2244, %v2542
        %v2544 = vrot.slane %v1955, %v2543
        %v2545 = vlaneseq
        %v2546 = vshrl.u32 %v2545, 7
        %v2547 = vsub.s32 %v2244, %v2546
        %v2548 = vrot.slane %v1958, %v2547
        %v2549 = vlaneseq
        %v2550 = vshrl.u32 %v2549, 7
        %v2551 = vsub.s32 %v2244, %v2550
        %v2552 = vrot.slane %v1961, %v2551
        %v2553 = vlaneseq
        %v2554 = vshrl.u32 %v2553, 7
        %v2555 = vsub.s32 %v2244, %v2554
        %v2556 = vrot.slane %v1964, %v2555
        %v2557 = vlaneseq
        %v2558 = vshrl.u32 %v2557, 7
        %v2559 = vsub.s32 %v2244, %v2558
        %v2560 = vrot.slane %v1967, %v2559
        %v2561 = vlaneseq
        %v2562 = vshrl.u32 %v2561, 7
        %v2563 = vsub.s32 %v2244, %v2562
        %v2564 = vrot.slane %v1970, %v2563
        %v2565 = vlaneseq
        %v2566 = vshrl.u32 %v2565, 7
        %v2567 = vsub.s32 %v2244, %v2566
        %v2568 = vrot.slane %v1973, %v2567
        %v2569 = vlaneseq
        %v2570 = vshrl.u32 %v2569, 7
        %v2571 = vsub.s32 %v2244, %v2570
        %v2572 = vrot.slane %v1976, %v2571
        %v2573 = vlaneseq
        %v2574 = vshrl.u32 %v2573, 7
        %v2575 = vsub.s32 %v2244, %v2574
        %v2576 = vrot.slane %v1979, %v2575
        %v2577 = vlaneseq
        %v2578 = vshrl.u32 %v2577, 7
        %v2579 = vsub.s32 %v2244, %v2578
        %v2580 = vrot.slane %v1982, %v2579
        %v2581 = vlaneseq
        %v2582 = vshrl.u32 %v2581, 7
        %v2583 = vsub.s32 %v2244, %v2582
        %v2584 = vrot.slane %v1985, %v2583
        %v2585 = vlaneseq
        %v2586 = vshrl.u32 %v2585, 7
        %v2587 = vsub.s32 %v2244, %v2586
        %v2588 = vrot.slane %v1988, %v2587
        %v2589 = vlaneseq
        %v2590 = vshrl.u32 %v2589, 7
        %v2591 = vsub.s32 %v2244, %v2590
        %v2592 = vrot.slane %v1991, %v2591
        %v2593 = vlaneseq
        %v2594 = vshrl.u32 %v2593, 7
        %v2595 = vsub.s32 %v2244, %v2594
        %v2596 = vrot.slane %v1994, %v2595
        %v2597 = vlaneseq
        %v2598 = vshrl.u32 %v2597, 7
        %v2599 = vsub.s32 %v2244, %v2598
        %v2600 = vrot.slane %v1997, %v2599
        %v2601 = vlaneseq
        %v2602 = vshrl.u32 %v2601, 7
        %v2603 = vsub.s32 %v2244, %v2602
        %v2604 = vrot.slane %v2000, %v2603
        %v2605 = vlaneseq
        %v2606 = vshrl.u32 %v2605, 7
        %v2607 = vsub.s32 %v2244, %v2606
        %v2608 = vrot.slane %v2003, %v2607
        %v2609 = vlaneseq
        %v2610 = vshrl.u32 %v2609, 7
        %v2611 = vsub.s32 %v2244, %v2610
        %v2612 = vrot.slane %v2006, %v2611
        %v2613 = vlaneseq
        %v2614 = vshrl.u32 %v2613, 7
        %v2615 = vsub.s32 %v2244, %v2614
        %v2616 = vrot.slane %v2009, %v2615
        %v2617 = vlaneseq
        %v2618 = vshrl.u32 %v2617, 7
        %v2619 = vsub.s32 %v2244, %v2618
        %v2620 = vrot.slane %v2012, %v2619
        %v2621 = vlaneseq
        %v2622 = vshrl.u32 %v2621, 7
        %v2623 = vsub.s32 %v2244, %v2622
        %v2624 = vrot.slane %v2015, %v2623
        %v2625 = vlaneseq
        %v2626 = vshrl.u32 %v2625, 7
        %v2627 = vsub.s32 %v2244, %v2626
        %v2628 = vrot.slane %v2018, %v2627
        %v2629 = vlaneseq
        %v2630 = vshrl.u32 %v2629, 7
        %v2631 = vsub.s32 %v2244, %v2630
        %v2632 = vrot.slane %v2021, %v2631
        %v2633 = vlaneseq
        %v2634 = vshrl.u32 %v2633, 7
        %v2635 = vsub.s32 %v2244, %v2634
        %v2636 = vrot.slane %v2024, %v2635
        %v2637 = vlaneseq
        %v2638 = vshrl.u32 %v2637, 7
        %v2639 = vsub.s32 %v2244, %v2638
        %v2640 = vrot.slane %v2027, %v2639
        %v2641 = vlaneseq
        %v2642 = vshrl.u32 %v2641, 7
        %v2643 = vsub.s32 %v2244, %v2642
        %v2644 = vrot.slane %v2030, %v2643
        %v2645 = vlaneseq
        %v2646 = vshrl.u32 %v2645, 7
        %v2647 = vsub.s32 %v2244, %v2646
        %v2648 = vrot.slane %v2033, %v2647
        %v2649 = vlaneseq
        %v2650 = vshrl.u32 %v2649, 7
        %v2651 = vsub.s32 %v2244, %v2650
        %v2652 = vrot.slane %v2036, %v2651
        %v2653 = vlaneseq
        %v2654 = vshrl.u32 %v2653, 7
        %v2655 = vsub.s32 %v2244, %v2654
        %v2656 = vrot.slane %v2039, %v2655
        %v2657 = vlaneseq
        %v2658 = vshrl.u32 %v2657, 7
        %v2659 = vsub.s32 %v2244, %v2658
        %v2660 = vrot.slane %v2042, %v2659
        %v2661 = vlaneseq
        %v2662 = vshrl.u32 %v2661, 7
        %v2663 = vsub.s32 %v2244, %v2662
        %v2664 = vrot.slane %v2045, %v2663
        %v2665 = vlaneseq
        %v2666 = vshrl.u32 %v2665, 7
        %v2667 = vsub.s32 %v2244, %v2666
        %v2668 = vrot.slane %v2048, %v2667
        %v2669 = vlaneseq
        %v2670 = vshrl.u32 %v2669, 7
        %v2671 = vsub.s32 %v2244, %v2670
        %v2672 = vrot.slane %v2051, %v2671
        %v2673 = vlaneseq
        %v2674 = vshrl.u32 %v2673, 7
        %v2675 = vsub.s32 %v2244, %v2674
        %v2676 = vrot.slane %v2054, %v2675
        %v2677 = vlaneseq
        %v2678 = vshrl.u32 %v2677, 7
        %v2679 = vsub.s32 %v2244, %v2678
        %v2680 = vrot.slane %v2057, %v2679
        %v2681 = vlaneseq
        %v2682 = vshrl.u32 %v2681, 7
        %v2683 = vsub.s32 %v2244, %v2682
        %v2684 = vrot.slane %v2060, %v2683
        %v2685 = vlaneseq
        %v2686 = vshrl.u32 %v2685, 7
        %v2687 = vsub.s32 %v2244, %v2686
        %v2688 = vrot.slane %v2063, %v2687
        %v2689 = vlaneseq
        %v2690 = vshrl.u32 %v2689, 7
        %v2691 = vsub.s32 %v2244, %v2690
        %v2692 = vrot.slane %v2066, %v2691
        %v2693 = vlaneseq
        %v2694 = vshrl.u32 %v2693, 7
        %v2695 = vsub.s32 %v2244, %v2694
        %v2696 = vrot.slane %v2069, %v2695
        %v2697 = vlaneseq
        %v2698 = vshrl.u32 %v2697, 7
        %v2699 = vsub.s32 %v2244, %v2698
        %v2700 = vrot.slane %v2072, %v2699
        %v2701 = vlaneseq
        %v2702 = vshrl.u32 %v2701, 7
        %v2703 = vsub.s32 %v2244, %v2702
        %v2704 = vrot.slane %v2075, %v2703
        %v2705 = vlaneseq
        %v2706 = vshrl.u32 %v2705, 7
        %v2707 = vsub.s32 %v2244, %v2706
        %v2708 = vrot.slane %v2078, %v2707
        %v2709 = vlaneseq
        %v2710 = vshrl.u32 %v2709, 7
        %v2711 = vsub.s32 %v2244, %v2710
        %v2712 = vrot.slane %v2081, %v2711
        %v2713 = vlaneseq
        %v2714 = vshrl.u32 %v2713, 7
        %v2715 = vsub.s32 %v2244, %v2714
        %v2716 = vrot.slane %v2084, %v2715
        %v2717 = vlaneseq
        %v2718 = vshrl.u32 %v2717, 7
        %v2719 = vsub.s32 %v2244, %v2718
        %v2720 = vrot.slane %v2087, %v2719
        %v2721 = vlaneseq
        %v2722 = vshrl.u32 %v2721, 7
        %v2723 = vsub.s32 %v2244, %v2722
        %v2724 = vrot.slane %v2090, %v2723
        %v2725 = vlaneseq
        %v2726 = vshrl.u32 %v2725, 7
        %v2727 = vsub.s32 %v2244, %v2726
        %v2728 = vrot.slane %v2093, %v2727
        %v2729 = vlaneseq
        %v2730 = vshrl.u32 %v2729, 7
        %v2731 = vsub.s32 %v2244, %v2730
        %v2732 = vrot.slane %v2096, %v2731
        %v2733 = vlaneseq
        %v2734 = vshrl.u32 %v2733, 7
        %v2735 = vsub.s32 %v2244, %v2734
        %v2736 = vrot.slane %v2099, %v2735
        %v2737 = vlaneseq
        %v2738 = vshrl.u32 %v2737, 7
        %v2739 = vsub.s32 %v2244, %v2738
        %v2740 = vrot.slane %v2102, %v2739
        %v2741 = vlaneseq
        %v2742 = vshrl.u32 %v2741, 7
        %v2743 = vsub.s32 %v2244, %v2742
        %v2744 = vrot.slane %v2105, %v2743
        %v2745 = vlaneseq
        %v2746 = vshrl.u32 %v2745, 7
        %v2747 = vsub.s32 %v2244, %v2746
        %v2748 = vrot.slane %v2108, %v2747
        %v2749 = vlaneseq
        %v2750 = vshrl.u32 %v2749, 7
        %v2751 = vsub.s32 %v2244, %v2750
        %v2752 = vrot.slane %v2111, %v2751
        %v2753 = vlaneseq
        %v2754 = vshrl.u32 %v2753, 7
        %v2755 = vsub.s32 %v2244, %v2754
        %v2756 = vrot.slane %v2114, %v2755
        %vm2757 = vcmask 1041409
        %v2758 = vsel %vm2757, %v2252, %v2248
        %v2759 = vsel %vm2757, %v2260, %v2256
        %v2760 = vsel %vm2757, %v2268, %v2264
        %v2761 = vsel %vm2757, %v2276, %v2272
        %v2762 = vsel %vm2757, %v2284, %v2280
        %v2763 = vsel %vm2757, %v2292, %v2288
        %v2764 = vsel %vm2757, %v2300, %v2296
        %v2765 = vsel %vm2757, %v2308, %v2304
        %v2766 = vsel %vm2757, %v2316, %v2312
        %v2767 = vsel %vm2757, %v2324, %v2320
        %v2768 = vsel %vm2757, %v2332, %v2328
        %v2769 = vsel %vm2757, %v2340, %v2336
        %v2770 = vsel %vm2757, %v2348, %v2344
        %v2771 = vsel %vm2757, %v2356, %v2352
        %v2772 = vsel %vm2757, %v2364, %v2360
        %v2773 = vsel %vm2757, %v2372, %v2368
        %v2774 = vsel %vm2757, %v2380, %v2376
        %v2775 = vsel %vm2757, %v2388, %v2384
        %v2776 = vsel %vm2757, %v2396, %v2392
        %v2777 = vsel %vm2757, %v2404, %v2400
        %v2778 = vsel %vm2757, %v2412, %v2408
        %v2779 = vsel %vm2757, %v2420, %v2416
        %v2780 = vsel %vm2757, %v2428, %v2424
        %v2781 = vsel %vm2757, %v2436, %v2432
        %v2782 = vsel %vm2757, %v2444, %v2440
        %v2783 = vsel %vm2757, %v2452, %v2448
        %v2784 = vsel %vm2757, %v2460, %v2456
        %v2785 = vsel %vm2757, %v2468, %v2464
        %v2786 = vsel %vm2757, %v2476, %v2472
        %v2787 = vsel %vm2757, %v2484, %v2480
        %v2788 = vsel %vm2757, %v2492, %v2488
        %v2789 = vsel %vm2757, %v2500, %v2496
        %v2790 = vsel %vm2757, %v2508, %v2504
        %v2791 = vsel %vm2757, %v2516, %v2512
        %v2792 = vsel %vm2757, %v2524, %v2520
        %v2793 = vsel %vm2757, %v2532, %v2528
        %v2794 = vsel %vm2757, %v2540, %v2536
        %v2795 = vsel %vm2757, %v2548, %v2544
        %v2796 = vsel %vm2757, %v2556, %v2552
        %v2797 = vsel %vm2757, %v2564, %v2560
        %v2798 = vsel %vm2757, %v2572, %v2568
        %v2799 = vsel %vm2757, %v2580, %v2576
        %v2800 = vsel %vm2757, %v2588, %v2584
        %v2801 = vsel %vm2757, %v2596, %v2592
        %v2802 = vsel %vm2757, %v2604, %v2600
        %v2803 = vsel %vm2757, %v2612, %v2608
        %v2804 = vsel %vm2757, %v2620, %v2616
        %v2805 = vsel %vm2757, %v2628, %v2624
        %v2806 = vsel %vm2757, %v2636, %v2632
        %v2807 = vsel %vm2757, %v2644, %v2640
        %v2808 = vsel %vm2757, %v2652, %v2648
        %v2809 = vsel %vm2757, %v2660, %v2656
        %v2810 = vsel %vm2757, %v2668, %v2664
        %v2811 = vsel %vm2757, %v2676, %v2672
        %v2812 = vsel %vm2757, %v2684, %v2680
        %v2813 = vsel %vm2757, %v2692, %v2688
        %v2814 = vsel %vm2757, %v2700, %v2696
        %v2815 = vsel %vm2757, %v2708, %v2704
        %v2816 = vsel %vm2757, %v2716, %v2712
        %v2817 = vsel %vm2757, %v2724, %v2720
        %v2818 = vsel %vm2757, %v2732, %v2728
        %v2819 = vsel %vm2757, %v2740, %v2736
        %v2820 = vsel %vm2757, %v2748, %v2744
        %v2821 = vsel %vm2757, %v2756, %v2752
        %vm2886 = vcmask 9216
        %v2887 = vsel %vm2886, %v2758, -inf
        %2888 = vmax.xlane.f32.xlu0 %v2887
        %v2889 = vpop.xlane.xlu0 %2888
        %v2890 = vsel %vm2886, %v2759, -inf
        %2891 = vmax.xlane.f32.xlu0 %v2890
        %v2892 = vpop.xlane.xlu0 %2891
        %v2893 = vsel %vm2886, %v2760, -inf
        %2894 = vmax.xlane.f32.xlu0 %v2893
        %v2895 = vpop.xlane.xlu0 %2894
        %v2896 = vsel %vm2886, %v2761, -inf
        %2897 = vmax.xlane.f32.xlu0 %v2896
        %v2898 = vpop.xlane.xlu0 %2897
        %v2899 = vsel %vm2886, %v2762, -inf
        %2900 = vmax.xlane.f32.xlu0 %v2899
        %v2901 = vpop.xlane.xlu0 %2900
        %v2902 = vsel %vm2886, %v2763, -inf
        %2903 = vmax.xlane.f32.xlu0 %v2902
        %v2904 = vpop.xlane.xlu0 %2903
        %v2905 = vsel %vm2886, %v2764, -inf
        %2906 = vmax.xlane.f32.xlu0 %v2905
        %v2907 = vpop.xlane.xlu0 %2906
        %v2908 = vsel %vm2886, %v2765, -inf
        %2909 = vmax.xlane.f32.xlu0 %v2908
        %v2910 = vpop.xlane.xlu0 %2909
        %v2911 = vsel %vm2886, %v2766, -inf
        %2912 = vmax.xlane.f32.xlu0 %v2911
        %v2913 = vpop.xlane.xlu0 %2912
        %v2914 = vsel %vm2886, %v2767, -inf
        %2915 = vmax.xlane.f32.xlu0 %v2914
        %v2916 = vpop.xlane.xlu0 %2915
        %v2917 = vsel %vm2886, %v2768, -inf
        %2918 = vmax.xlane.f32.xlu0 %v2917
        %v2919 = vpop.xlane.xlu0 %2918
        %v2920 = vsel %vm2886, %v2769, -inf
        %2921 = vmax.xlane.f32.xlu0 %v2920
        %v2922 = vpop.xlane.xlu0 %2921
        %v2923 = vsel %vm2886, %v2770, -inf
        %2924 = vmax.xlane.f32.xlu0 %v2923
        %v2925 = vpop.xlane.xlu0 %2924
        %v2926 = vsel %vm2886, %v2771, -inf
        %2927 = vmax.xlane.f32.xlu0 %v2926
        %v2928 = vpop.xlane.xlu0 %2927
        %v2929 = vsel %vm2886, %v2772, -inf
        %2930 = vmax.xlane.f32.xlu0 %v2929
        %v2931 = vpop.xlane.xlu0 %2930
        %v2932 = vsel %vm2886, %v2773, -inf
        %2933 = vmax.xlane.f32.xlu0 %v2932
        %v2934 = vpop.xlane.xlu0 %2933
        %v2935 = vsel %vm2886, %v2774, -inf
        %2936 = vmax.xlane.f32.xlu0 %v2935
        %v2937 = vpop.xlane.xlu0 %2936
        %v2938 = vsel %vm2886, %v2775, -inf
        %2939 = vmax.xlane.f32.xlu0 %v2938
        %v2940 = vpop.xlane.xlu0 %2939
        %v2941 = vsel %vm2886, %v2776, -inf
        %2942 = vmax.xlane.f32.xlu0 %v2941
        %v2943 = vpop.xlane.xlu0 %2942
        %v2944 = vsel %vm2886, %v2777, -inf
        %2945 = vmax.xlane.f32.xlu0 %v2944
        %v2946 = vpop.xlane.xlu0 %2945
        %v2947 = vsel %vm2886, %v2778, -inf
        %2948 = vmax.xlane.f32.xlu0 %v2947
        %v2949 = vpop.xlane.xlu0 %2948
        %v2950 = vsel %vm2886, %v2779, -inf
        %2951 = vmax.xlane.f32.xlu0 %v2950
        %v2952 = vpop.xlane.xlu0 %2951
        %v2953 = vsel %vm2886, %v2780, -inf
        %2954 = vmax.xlane.f32.xlu0 %v2953
        %v2955 = vpop.xlane.xlu0 %2954
        %v2956 = vsel %vm2886, %v2781, -inf
        %2957 = vmax.xlane.f32.xlu0 %v2956
        %v2958 = vpop.xlane.xlu0 %2957
        %v2959 = vsel %vm2886, %v2782, -inf
        %2960 = vmax.xlane.f32.xlu0 %v2959
        %v2961 = vpop.xlane.xlu0 %2960
        %v2962 = vsel %vm2886, %v2783, -inf
        %2963 = vmax.xlane.f32.xlu0 %v2962
        %v2964 = vpop.xlane.xlu0 %2963
        %v2965 = vsel %vm2886, %v2784, -inf
        %2966 = vmax.xlane.f32.xlu0 %v2965
        %v2967 = vpop.xlane.xlu0 %2966
        %v2968 = vsel %vm2886, %v2785, -inf
        %2969 = vmax.xlane.f32.xlu0 %v2968
        %v2970 = vpop.xlane.xlu0 %2969
        %v2971 = vsel %vm2886, %v2786, -inf
        %2972 = vmax.xlane.f32.xlu0 %v2971
        %v2973 = vpop.xlane.xlu0 %2972
        %v2974 = vsel %vm2886, %v2787, -inf
        %2975 = vmax.xlane.f32.xlu0 %v2974
        %v2976 = vpop.xlane.xlu0 %2975
        %v2977 = vsel %vm2886, %v2788, -inf
        %2978 = vmax.xlane.f32.xlu0 %v2977
        %v2979 = vpop.xlane.xlu0 %2978
        %v2980 = vsel %vm2886, %v2789, -inf
        %2981 = vmax.xlane.f32.xlu0 %v2980
        %v2982 = vpop.xlane.xlu0 %2981
        %v2983 = vsel %vm2886, %v2790, -inf
        %2984 = vmax.xlane.f32.xlu0 %v2983
        %v2985 = vpop.xlane.xlu0 %2984
        %v2986 = vsel %vm2886, %v2791, -inf
        %2987 = vmax.xlane.f32.xlu0 %v2986
        %v2988 = vpop.xlane.xlu0 %2987
        %v2989 = vsel %vm2886, %v2792, -inf
        %2990 = vmax.xlane.f32.xlu0 %v2989
        %v2991 = vpop.xlane.xlu0 %2990
        %v2992 = vsel %vm2886, %v2793, -inf
        %2993 = vmax.xlane.f32.xlu0 %v2992
        %v2994 = vpop.xlane.xlu0 %2993
        %v2995 = vsel %vm2886, %v2794, -inf
        %2996 = vmax.xlane.f32.xlu0 %v2995
        %v2997 = vpop.xlane.xlu0 %2996
        %v2998 = vsel %vm2886, %v2795, -inf
        %2999 = vmax.xlane.f32.xlu0 %v2998
        %v3000 = vpop.xlane.xlu0 %2999
        %v3001 = vsel %vm2886, %v2796, -inf
        %3002 = vmax.xlane.f32.xlu0 %v3001
        %v3003 = vpop.xlane.xlu0 %3002
        %v3004 = vsel %vm2886, %v2797, -inf
        %3005 = vmax.xlane.f32.xlu0 %v3004
        %v3006 = vpop.xlane.xlu0 %3005
        %v3007 = vsel %vm2886, %v2798, -inf
        %3008 = vmax.xlane.f32.xlu0 %v3007
        %v3009 = vpop.xlane.xlu0 %3008
        %v3010 = vsel %vm2886, %v2799, -inf
        %3011 = vmax.xlane.f32.xlu0 %v3010
        %v3012 = vpop.xlane.xlu0 %3011
        %v3013 = vsel %vm2886, %v2800, -inf
        %3014 = vmax.xlane.f32.xlu0 %v3013
        %v3015 = vpop.xlane.xlu0 %3014
        %v3016 = vsel %vm2886, %v2801, -inf
        %3017 = vmax.xlane.f32.xlu0 %v3016
        %v3018 = vpop.xlane.xlu0 %3017
        %v3019 = vsel %vm2886, %v2802, -inf
        %3020 = vmax.xlane.f32.xlu0 %v3019
        %v3021 = vpop.xlane.xlu0 %3020
        %v3022 = vsel %vm2886, %v2803, -inf
        %3023 = vmax.xlane.f32.xlu0 %v3022
        %v3024 = vpop.xlane.xlu0 %3023
        %v3025 = vsel %vm2886, %v2804, -inf
        %3026 = vmax.xlane.f32.xlu0 %v3025
        %v3027 = vpop.xlane.xlu0 %3026
        %v3028 = vsel %vm2886, %v2805, -inf
        %3029 = vmax.xlane.f32.xlu0 %v3028
        %v3030 = vpop.xlane.xlu0 %3029
        %v3031 = vsel %vm2886, %v2806, -inf
        %3032 = vmax.xlane.f32.xlu0 %v3031
        %v3033 = vpop.xlane.xlu0 %3032
        %v3034 = vsel %vm2886, %v2807, -inf
        %3035 = vmax.xlane.f32.xlu0 %v3034
        %v3036 = vpop.xlane.xlu0 %3035
        %v3037 = vsel %vm2886, %v2808, -inf
        %3038 = vmax.xlane.f32.xlu0 %v3037
        %v3039 = vpop.xlane.xlu0 %3038
        %v3040 = vsel %vm2886, %v2809, -inf
        %3041 = vmax.xlane.f32.xlu0 %v3040
        %v3042 = vpop.xlane.xlu0 %3041
        %v3043 = vsel %vm2886, %v2810, -inf
        %3044 = vmax.xlane.f32.xlu0 %v3043
        %v3045 = vpop.xlane.xlu0 %3044
        %v3046 = vsel %vm2886, %v2811, -inf
        %3047 = vmax.xlane.f32.xlu0 %v3046
        %v3048 = vpop.xlane.xlu0 %3047
        %v3049 = vsel %vm2886, %v2812, -inf
        %3050 = vmax.xlane.f32.xlu0 %v3049
        %v3051 = vpop.xlane.xlu0 %3050
        %v3052 = vsel %vm2886, %v2813, -inf
        %3053 = vmax.xlane.f32.xlu0 %v3052
        %v3054 = vpop.xlane.xlu0 %3053
        %v3055 = vsel %vm2886, %v2814, -inf
        %3056 = vmax.xlane.f32.xlu0 %v3055
        %v3057 = vpop.xlane.xlu0 %3056
        %v3058 = vsel %vm2886, %v2815, -inf
        %3059 = vmax.xlane.f32.xlu0 %v3058
        %v3060 = vpop.xlane.xlu0 %3059
        %v3061 = vsel %vm2886, %v2816, -inf
        %3062 = vmax.xlane.f32.xlu0 %v3061
        %v3063 = vpop.xlane.xlu0 %3062
        %v3064 = vsel %vm2886, %v2817, -inf
        %3065 = vmax.xlane.f32.xlu0 %v3064
        %v3066 = vpop.xlane.xlu0 %3065
        %v3067 = vsel %vm2886, %v2818, -inf
        %3068 = vmax.xlane.f32.xlu0 %v3067
        %v3069 = vpop.xlane.xlu0 %3068
        %v3070 = vsel %vm2886, %v2819, -inf
        %3071 = vmax.xlane.f32.xlu0 %v3070
        %v3072 = vpop.xlane.xlu0 %3071
        %v3073 = vsel %vm2886, %v2820, -inf
        %3074 = vmax.xlane.f32.xlu0 %v3073
        %v3075 = vpop.xlane.xlu0 %3074
        %v3076 = vsel %vm2886, %v2821, -inf
        %3077 = vmax.xlane.f32.xlu0 %v3076
        %v3078 = vpop.xlane.xlu0 %3077
        %vm3079 = vcmask 1041408
        %v3080 = vsel %vm3079, %v2889, -inf
        %v3081 = vsel %vm3079, %v2892, -inf
        %v3082 = vmax.f32 %v3080, %v3081
        %v3083 = vsel %vm3079, %v2895, -inf
        %v3084 = vmax.f32 %v3082, %v3083
        %v3085 = vsel %vm3079, %v2898, -inf
        %v3086 = vmax.f32 %v3084, %v3085
        %v3087 = vsel %vm3079, %v2901, -inf
        %v3088 = vsel %vm3079, %v2904, -inf
        %v3089 = vmax.f32 %v3087, %v3088
        %v3090 = vsel %vm3079, %v2907, -inf
        %v3091 = vmax.f32 %v3089, %v3090
        %v3092 = vsel %vm3079, %v2910, -inf
        %v3093 = vmax.f32 %v3091, %v3092
        %v3094 = vsel %vm3079, %v2913, -inf
        %v3095 = vsel %vm3079, %v2916, -inf
        %v3096 = vmax.f32 %v3094, %v3095
        %v3097 = vsel %vm3079, %v2919, -inf
        %v3098 = vmax.f32 %v3096, %v3097
        %v3099 = vsel %vm3079, %v2922, -inf
        %v3100 = vmax.f32 %v3098, %v3099
        %v3101 = vsel %vm3079, %v2925, -inf
        %v3102 = vsel %vm3079, %v2928, -inf
        %v3103 = vmax.f32 %v3101, %v3102
        %v3104 = vsel %vm3079, %v2931, -inf
        %v3105 = vmax.f32 %v3103, %v3104
        %v3106 = vsel %vm3079, %v2934, -inf
        %v3107 = vmax.f32 %v3105, %v3106
        %v3108 = vsel %vm3079, %v2937, -inf
        %v3109 = vsel %vm3079, %v2940, -inf
        %v3110 = vmax.f32 %v3108, %v3109
        %v3111 = vsel %vm3079, %v2943, -inf
        %v3112 = vmax.f32 %v3110, %v3111
        %v3113 = vsel %vm3079, %v2946, -inf
        %v3114 = vmax.f32 %v3112, %v3113
        %v3115 = vsel %vm3079, %v2949, -inf
        %v3116 = vsel %vm3079, %v2952, -inf
        %v3117 = vmax.f32 %v3115, %v3116
        %v3118 = vsel %vm3079, %v2955, -inf
        %v3119 = vmax.f32 %v3117, %v3118
        %v3120 = vsel %vm3079, %v2958, -inf
        %v3121 = vmax.f32 %v3119, %v3120
        %v3122 = vsel %vm3079, %v2961, -inf
        %v3123 = vsel %vm3079, %v2964, -inf
        %v3124 = vmax.f32 %v3122, %v3123
        %v3125 = vsel %vm3079, %v2967, -inf
        %v3126 = vmax.f32 %v3124, %v3125
        %v3127 = vsel %vm3079, %v2970, -inf
        %v3128 = vmax.f32 %v3126, %v3127
        %v3129 = vsel %vm3079, %v2973, -inf
        %v3130 = vsel %vm3079, %v2976, -inf
        %v3131 = vmax.f32 %v3129, %v3130
        %v3132 = vsel %vm3079, %v2979, -inf
        %v3133 = vmax.f32 %v3131, %v3132
        %v3134 = vsel %vm3079, %v2982, -inf
        %v3135 = vmax.f32 %v3133, %v3134
        %v3136 = vsel %vm3079, %v2985, -inf
        %v3137 = vsel %vm3079, %v2988, -inf
        %v3138 = vmax.f32 %v3136, %v3137
        %v3139 = vsel %vm3079, %v2991, -inf
        %v3140 = vmax.f32 %v3138, %v3139
        %v3141 = vsel %vm3079, %v2994, -inf
        %v3142 = vmax.f32 %v3140, %v3141
        %v3143 = vsel %vm3079, %v2997, -inf
        %v3144 = vsel %vm3079, %v3000, -inf
        %v3145 = vmax.f32 %v3143, %v3144
        %v3146 = vsel %vm3079, %v3003, -inf
        %v3147 = vmax.f32 %v3145, %v3146
        %v3148 = vsel %vm3079, %v3006, -inf
        %v3149 = vmax.f32 %v3147, %v3148
        %v3150 = vsel %vm3079, %v3009, -inf
        %v3151 = vsel %vm3079, %v3012, -inf
        %v3152 = vmax.f32 %v3150, %v3151
        %v3153 = vsel %vm3079, %v3015, -inf
        %v3154 = vmax.f32 %v3152, %v3153
        %v3155 = vsel %vm3079, %v3018, -inf
        %v3156 = vmax.f32 %v3154, %v3155
        %v3157 = vsel %vm3079, %v3021, -inf
        %v3158 = vsel %vm3079, %v3024, -inf
        %v3159 = vmax.f32 %v3157, %v3158
        %v3160 = vsel %vm3079, %v3027, -inf
        %v3161 = vmax.f32 %v3159, %v3160
        %v3162 = vsel %vm3079, %v3030, -inf
        %v3163 = vmax.f32 %v3161, %v3162
        %v3164 = vsel %vm3079, %v3033, -inf
        %v3165 = vsel %vm3079, %v3036, -inf
        %v3166 = vmax.f32 %v3164, %v3165
        %v3167 = vsel %vm3079, %v3039, -inf
        %v3168 = vmax.f32 %v3166, %v3167
        %v3169 = vsel %vm3079, %v3042, -inf
        %v3170 = vmax.f32 %v3168, %v3169
        %v3171 = vsel %vm3079, %v3045, -inf
        %v3172 = vsel %vm3079, %v3048, -inf
        %v3173 = vmax.f32 %v3171, %v3172
        %v3174 = vsel %vm3079, %v3051, -inf
        %v3175 = vmax.f32 %v3173, %v3174
        %v3176 = vsel %vm3079, %v3054, -inf
        %v3177 = vmax.f32 %v3175, %v3176
        %v3178 = vsel %vm3079, %v3057, -inf
        %v3179 = vsel %vm3079, %v3060, -inf
        %v3180 = vmax.f32 %v3178, %v3179
        %v3181 = vsel %vm3079, %v3063, -inf
        %v3182 = vmax.f32 %v3180, %v3181
        %v3183 = vsel %vm3079, %v3066, -inf
        %v3184 = vmax.f32 %v3182, %v3183
        %v3185 = vsel %vm3079, %v3069, -inf
        %v3186 = vsel %vm3079, %v3072, -inf
        %v3187 = vmax.f32 %v3185, %v3186
        %v3188 = vsel %vm3079, %v3075, -inf
        %v3189 = vmax.f32 %v3187, %v3188
        %v3190 = vsel %vm3079, %v3078, -inf
        %v3191 = vmax.f32 %v3189, %v3190
        %v3192 = vsel %vm3079, %v3086, -inf
        %v3193 = vsel %vm3079, %v3093, -inf
        %v3194 = vmax.f32 %v3192, %v3193
        %v3195 = vsel %vm3079, %v3100, -inf
        %v3196 = vsel %vm3079, %v3107, -inf
        %v3197 = vmax.f32 %v3195, %v3196
        %v3198 = vsel %vm3079, %v3114, -inf
        %v3199 = vsel %vm3079, %v3121, -inf
        %v3200 = vmax.f32 %v3198, %v3199
        %v3201 = vsel %vm3079, %v3128, -inf
        %v3202 = vsel %vm3079, %v3135, -inf
        %v3203 = vmax.f32 %v3201, %v3202
        %v3204 = vsel %vm3079, %v3142, -inf
        %v3205 = vsel %vm3079, %v3149, -inf
        %v3206 = vmax.f32 %v3204, %v3205
        %v3207 = vsel %vm3079, %v3156, -inf
        %v3208 = vsel %vm3079, %v3163, -inf
        %v3209 = vmax.f32 %v3207, %v3208
        %v3210 = vsel %vm3079, %v3170, -inf
        %v3211 = vsel %vm3079, %v3177, -inf
        %v3212 = vmax.f32 %v3210, %v3211
        %v3213 = vsel %vm3079, %v3184, -inf
        %v3214 = vsel %vm3079, %v3191, -inf
        %v3215 = vmax.f32 %v3213, %v3214
        %v3224 = vlaneseq
        %v3225 = vshrl.u32 %v3224, 7
        %v3226 = vsub.s32 %v2244, %v3225
        %v3227 = vrot.slane %v3194, %v3226
        %v3228 = vlaneseq
        %v3229 = vshrl.u32 %v3228, 7
        %v3230 = vsub.s32 %v2244, %v3229
        %v3231 = vrot.slane %v3197, %v3230
        %v3232 = vlaneseq
        %v3233 = vshrl.u32 %v3232, 7
        %v3234 = vsub.s32 %v2244, %v3233
        %v3235 = vrot.slane %v3200, %v3234
        %v3236 = vlaneseq
        %v3237 = vshrl.u32 %v3236, 7
        %v3238 = vsub.s32 %v2244, %v3237
        %v3239 = vrot.slane %v3203, %v3238
        %v3240 = vlaneseq
        %v3241 = vshrl.u32 %v3240, 7
        %v3242 = vsub.s32 %v2244, %v3241
        %v3243 = vrot.slane %v3206, %v3242
        %v3244 = vlaneseq
        %v3245 = vshrl.u32 %v3244, 7
        %v3246 = vsub.s32 %v2244, %v3245
        %v3247 = vrot.slane %v3209, %v3246
        %v3248 = vlaneseq
        %v3249 = vshrl.u32 %v3248, 7
        %v3250 = vsub.s32 %v2244, %v3249
        %v3251 = vrot.slane %v3212, %v3250
        %v3252 = vlaneseq
        %v3253 = vshrl.u32 %v3252, 7
        %v3254 = vsub.s32 %v2244, %v3253
        %v3255 = vrot.slane %v3215, %v3254
        %v3256 = vsel %vm2757, %v3231, %v3227
        %v3257 = vsel %vm2757, %v3239, %v3235
        %v3258 = vsel %vm2757, %v3247, %v3243
        %v3259 = vsel %vm2757, %v3255, %v3251
        %3264 = vst.msk [vmem:[%s252] sm:$0x3] %vm2886, %v3256
        %3265 = vst.msk [vmem:[%s252 + $0x2] sm:$0x3] %vm2886, %v3257
        %3266 = vst.msk [vmem:[%s252 + $0x4] sm:$0x3] %vm2886, %v3258
        %3267 = vst.msk [vmem:[%s252 + $0x6] sm:$0x3] %vm2886, %v3259
        %v3268 = vmax.f32 %v513, %v520
        %v3269 = vmax.f32 %v3268, %v527
        %v3270 = vmax.f32 %v3269, %v534
        %v3271 = vmax.f32 %v541, %v548
        %v3272 = vmax.f32 %v3271, %v555
        %v3273 = vmax.f32 %v3272, %v562
        %v3274 = vmax.f32 %v569, %v576
        %v3275 = vmax.f32 %v3274, %v583
        %v3276 = vmax.f32 %v3275, %v590
        %v3277 = vmax.f32 %v597, %v604
        %v3278 = vmax.f32 %v3277, %v611
        %v3279 = vmax.f32 %v3278, %v618
        %v3280 = vmax.f32 %v625, %v632
        %v3281 = vmax.f32 %v3280, %v639
        %v3282 = vmax.f32 %v3281, %v646
        %v3283 = vmax.f32 %v653, %v660
        %v3284 = vmax.f32 %v3283, %v667
        %v3285 = vmax.f32 %v3284, %v674
        %v3286 = vmax.f32 %v681, %v688
        %v3287 = vmax.f32 %v3286, %v695
        %v3288 = vmax.f32 %v3287, %v702
        %v3289 = vmax.f32 %v709, %v716
        %v3290 = vmax.f32 %v3289, %v723
        %v3291 = vmax.f32 %v3290, %v730
        %v3292 = vmax.f32 %v737, %v744
        %v3293 = vmax.f32 %v3292, %v751
        %v3294 = vmax.f32 %v3293, %v758
        %v3295 = vmax.f32 %v765, %v772
        %v3296 = vmax.f32 %v3295, %v779
        %v3297 = vmax.f32 %v3296, %v786
        %v3298 = vmax.f32 %v793, %v800
        %v3299 = vmax.f32 %v3298, %v807
        %v3300 = vmax.f32 %v3299, %v814
        %v3301 = vmax.f32 %v821, %v828
        %v3302 = vmax.f32 %v3301, %v835
        %v3303 = vmax.f32 %v3302, %v842
        %v3304 = vmax.f32 %v849, %v856
        %v3305 = vmax.f32 %v3304, %v863
        %v3306 = vmax.f32 %v3305, %v870
        %v3307 = vmax.f32 %v877, %v884
        %v3308 = vmax.f32 %v3307, %v891
        %v3309 = vmax.f32 %v3308, %v898
        %v3310 = vmax.f32 %v905, %v912
        %v3311 = vmax.f32 %v3310, %v919
        %v3312 = vmax.f32 %v3311, %v926
        %v3313 = vmax.f32 %v933, %v940
        %v3314 = vmax.f32 %v3313, %v947
        %v3315 = vmax.f32 %v3314, %v954
        %v3332 = vlaneseq
        %v3333 = vshrl.u32 %v3332, 7
        %v3334 = vsub.s32 %v2244, %v3333
        %v3335 = vrot.slane %v3270, %v3334
        %v3336 = vlaneseq
        %v3337 = vshrl.u32 %v3336, 7
        %v3338 = vsub.s32 %v2244, %v3337
        %v3339 = vrot.slane %v3273, %v3338
        %v3340 = vlaneseq
        %v3341 = vshrl.u32 %v3340, 7
        %v3342 = vsub.s32 %v2244, %v3341
        %v3343 = vrot.slane %v3276, %v3342
        %v3344 = vlaneseq
        %v3345 = vshrl.u32 %v3344, 7
        %v3346 = vsub.s32 %v2244, %v3345
        %v3347 = vrot.slane %v3279, %v3346
        %v3348 = vlaneseq
        %v3349 = vshrl.u32 %v3348, 7
        %v3350 = vsub.s32 %v2244, %v3349
        %v3351 = vrot.slane %v3282, %v3350
        %v3352 = vlaneseq
        %v3353 = vshrl.u32 %v3352, 7
        %v3354 = vsub.s32 %v2244, %v3353
        %v3355 = vrot.slane %v3285, %v3354
        %v3356 = vlaneseq
        %v3357 = vshrl.u32 %v3356, 7
        %v3358 = vsub.s32 %v2244, %v3357
        %v3359 = vrot.slane %v3288, %v3358
        %v3360 = vlaneseq
        %v3361 = vshrl.u32 %v3360, 7
        %v3362 = vsub.s32 %v2244, %v3361
        %v3363 = vrot.slane %v3291, %v3362
        %v3364 = vlaneseq
        %v3365 = vshrl.u32 %v3364, 7
        %v3366 = vsub.s32 %v2244, %v3365
        %v3367 = vrot.slane %v3294, %v3366
        %v3368 = vlaneseq
        %v3369 = vshrl.u32 %v3368, 7
        %v3370 = vsub.s32 %v2244, %v3369
        %v3371 = vrot.slane %v3297, %v3370
        %v3372 = vlaneseq
        %v3373 = vshrl.u32 %v3372, 7
        %v3374 = vsub.s32 %v2244, %v3373
        %v3375 = vrot.slane %v3300, %v3374
        %v3376 = vlaneseq
        %v3377 = vshrl.u32 %v3376, 7
        %v3378 = vsub.s32 %v2244, %v3377
        %v3379 = vrot.slane %v3303, %v3378
        %v3380 = vlaneseq
        %v3381 = vshrl.u32 %v3380, 7
        %v3382 = vsub.s32 %v2244, %v3381
        %v3383 = vrot.slane %v3306, %v3382
        %v3384 = vlaneseq
        %v3385 = vshrl.u32 %v3384, 7
        %v3386 = vsub.s32 %v2244, %v3385
        %v3387 = vrot.slane %v3309, %v3386
        %v3388 = vlaneseq
        %v3389 = vshrl.u32 %v3388, 7
        %v3390 = vsub.s32 %v2244, %v3389
        %v3391 = vrot.slane %v3312, %v3390
        %v3392 = vlaneseq
        %v3393 = vshrl.u32 %v3392, 7
        %v3394 = vsub.s32 %v2244, %v3393
        %v3395 = vrot.slane %v3315, %v3394
        %v3396 = vsel %vm2757, %v3339, %v3335
        %vm3397 = vcmask 1042434
        %v3398 = vsel %vm3397, %v3343, %v3396
        %vm3399 = vcmask 1043459
        %v3400 = vsel %vm3399, %v3347, %v3398
        %v3401 = vsel %vm2757, %v3355, %v3351
        %v3402 = vsel %vm3397, %v3359, %v3401
        %v3403 = vsel %vm3399, %v3363, %v3402
        %v3404 = vsel %vm2757, %v3371, %v3367
        %v3405 = vsel %vm3397, %v3375, %v3404
        %v3406 = vsel %vm3399, %v3379, %v3405
        %v3407 = vsel %vm2757, %v3387, %v3383
        %v3408 = vsel %vm3397, %v3391, %v3407
        %v3409 = vsel %vm3399, %v3395, %v3408
        %3414 = vst.msk [vmem:[%s233] sm:$0xf] %vm319, %v3400
        %3415 = vst.msk [vmem:[%s233 + $0x4] sm:$0xf] %vm319, %v3403
        %3416 = vst.msk [vmem:[%s233 + $0x8] sm:$0xf] %vm319, %v3406
        %3417 = vst.msk [vmem:[%s233 + $0xc] sm:$0xf] %vm319, %v3409
        %s3418 = smul.u32 4, %s26
        %p3419 = scmp.lt.s32.totalorder %s25, 1
        %s3420 = scalar_select %p3419, %s25, 1
        %p3421 = scmp.lt.s32.totalorder %s3418, 3
        %s3422 = scalar_select %p3421, %s3418, 3
        %s3423 = smul.addr %s3420, 4
        %s3424 = sadd.s32 %s3422, %s3423
        %s3425 = scalar_lea.vmem %s1, %s3424
        %s3426 = smul.u32 4, %s26
        %p3427 = scmp.lt.s32.totalorder %s25, 1
        %s3428 = scalar_select %p3427, %s25, 1
        %p3429 = scmp.lt.s32.totalorder %s3426, 3
        %s3430 = scalar_select %p3429, %s3426, 3
        %s3431 = smul.addr %s3428, 4
        %s3432 = sadd.s32 %s3430, %s3431
        %s3433 = smul.addr %s3432, 2
        %s3434 = scalar_lea.vmem %s2, %s3433
        %s3435 = sand.u32 %s127, 1
        %s3436 = scalar_lea.sflag [#allocation4], %s3435
        %s3437 = sand.u32 %s127, 1
        %s3438 = smul.addr %s3437, 16
        %s3439 = scalar_lea.vmem [#allocation5], %s3438
        // Predicated region
        $region29: #{tpu_custom_call.1} parent=23 // pred_check
          %p3440 = pneg %p81
        $region30: #{tpu_custom_call.1} parent=23 // pred_check_branch
          %3442 = sbr.rel (%p3440) target = $region32
        $region31: #{tpu_custom_call.1} parent=23 // pred_region
          %s3443 = smul.u32 4, %s26
        $region32: #{tpu_custom_call.1} parent=23 // pred_fallthru
          _
        // Predicated region
        $region33: #{tpu_custom_call.1} parent=23 // pred_check
          %p3444 = pneg %p109
        $region34: #{tpu_custom_call.1} parent=23 // pred_check_branch
          %3446 = sbr.rel (%p3444) target = $region36
        $region35: #{tpu_custom_call.1} parent=23 // pred_region
          %s3447 = smul.u32 4, %s26
        $region36: #{tpu_custom_call.1} parent=23 // pred_fallthru
          _
        // Predicated region
        $region37: #{tpu_custom_call.1} parent=23 // pred_check
          %p3448 = pneg %p137
        $region38: #{tpu_custom_call.1} parent=23 // pred_check_branch
          %3450 = sbr.rel (%p3448) target = $region40
        $region39: #{tpu_custom_call.1} parent=23 // pred_region
          %s3451 = smul.u32 4, %s26
          %s3453 = ssub.s32 256, 256
          %3454 = vsyncadd %s3436, %s3453
          %s3455 = smul.addr %s25, 4
          %s3456 = sadd.s32 %s3451, %s3455
          %s3457 = smul.addr %s3456, 64
          %s3458 = scalar_lea.hbm %s3, %s3457
          %s3459 = sshll.u32 %s3439, 4
          %s3460 = int_to_ptr.vmem [resolvable:$true] %s3459
          %3465 = dma.vmem_to_hbm [thread:$0]  %s3460, 256, %s3458, %s3436, 64, 64, 4
        $region40: #{tpu_custom_call.1} parent=23 // pred_fallthru
          _
      $region24: #{tpu_custom_call.1} parent=5 // pred_fallthru
        _
      %p3466 = scmp.le.s32.totalorder 2, %s16
      // Predicated region
      $region41: #{tpu_custom_call.1} parent=5 // pred_check
        %p3467 = pneg %p3466
      $region42: #{tpu_custom_call.1} parent=5 // pred_check_branch
        %3469 = sbr.rel (%p3467) target = $region44
      $region43: #{tpu_custom_call.1} parent=5 // pred_region
        %s3470 = ssub.s32 %s16, 2
        // Predicated region
        $region45: #{tpu_custom_call.1} parent=43 // pred_check
          %p3471 = pneg %p87
        $region46: #{tpu_custom_call.1} parent=43 // pred_check_branch
          %3473 = sbr.rel (%p3471) target = $region48
        $region47: #{tpu_custom_call.1} parent=43 // pred_region
          %s3474 = smul.u32 4, %s28
          %p3475 = scmp.lt.s32.totalorder %s27, 1
          %s3476 = scalar_select %p3475, %s27, 1
          %p3477 = scmp.lt.s32.totalorder %s3474, 3
          %s3478 = scalar_select %p3477, %s3474, 3
          %s3479 = smul.addr %s3476, 4
          %s3480 = sadd.s32 %s3478, %s3479
          %s3481 = scalar_lea.vmem %s1, %s3480
        $region48: #{tpu_custom_call.1} parent=43 // pred_fallthru
          _
        // Predicated region
        $region49: #{tpu_custom_call.1} parent=43 // pred_check
          %p3482 = pneg %p115
        $region50: #{tpu_custom_call.1} parent=43 // pred_check_branch
          %3484 = sbr.rel (%p3482) target = $region52
        $region51: #{tpu_custom_call.1} parent=43 // pred_region
          %s3485 = smul.u32 4, %s28
          %p3486 = scmp.lt.s32.totalorder %s27, 1
          %s3487 = scalar_select %p3486, %s27, 1
          %p3488 = scmp.lt.s32.totalorder %s3485, 3
          %s3489 = scalar_select %p3488, %s3485, 3
          %s3490 = smul.addr %s3487, 4
          %s3491 = sadd.s32 %s3489, %s3490
          %s3492 = smul.addr %s3491, 2
          %s3493 = scalar_lea.vmem %s2, %s3492
        $region52: #{tpu_custom_call.1} parent=43 // pred_fallthru
          _
        // Predicated region
        $region53: #{tpu_custom_call.1} parent=43 // pred_check
          %p3494 = pneg %p143
        $region54: #{tpu_custom_call.1} parent=43 // pred_check_branch
          %3496 = sbr.rel (%p3494) target = $region56
        $region55: #{tpu_custom_call.1} parent=43 // pred_region
          %s3497 = sand.u32 %s128, 1
          %s3498 = scalar_lea.sflag [#allocation4], %s3497
          %s3499 = sand.u32 %s128, 1
          %s3500 = smul.addr %s3499, 16
          %s3501 = scalar_lea.vmem [#allocation5], %s3500
          %3502 = dma.done %s3498, 256
        $region56: #{tpu_custom_call.1} parent=43 // pred_fallthru
          _
      $region44: #{tpu_custom_call.1} parent=5 // pred_fallthru
        _
    $region6: #{tpu_custom_call.1} parent=1 // loop_footer
      %s20 = sadd.s32 1, %s16
    $region7: #{tpu_custom_call.1} parent=1 // loop_footer_branch
      %15 = sbr.rel target = $region3
    $region8: #{tpu_custom_call.1} parent=1 // loop_exit
      _
    %3503 = vsyncpa [#allocation3], 1
    %s3504 = scalar_lea.sflag [#allocation3], 1
    %3505 = vsyncpa %s3504, 1
    %3506 = vsyncpa [#allocation4], 1
    %s3507 = scalar_lea.sflag [#allocation4], 1
    %3508 = vsyncpa %s3507, 1

</llo_original>
